<compile_context>
chip_gen: v6e
topology: v6e:2x2x1
jax: 0.10.0
libtpu: 0.0.40
codegen_flags: <defaults>
</compile_context>

<pallas_src>
import functools

import jax
import jax.numpy as jnp
from jax import lax
from jax.experimental import pallas as pl
from jax.experimental.pallas import tpu as pltpu

BN_EPS = 1e-5
CP = 128          # lane-dense padded output-channel count


# ---------------------------------------------------------------------------
# Pallas kernels
# ---------------------------------------------------------------------------
def _conv_stats_kernel(p_ref, w_ref, stats_ref):
    """Pass A (tiled): conv-as-matmul, emit ONLY per-tile BN partial sums.

    p_ref:     (4*TM, K) bf16 patches, rows ordered (pool_member, row_in_tile)
    w_ref:     (K, 128)  bf16 conv weights, out-channels zero-padded to 128
    stats_ref: (8, 128)  f32; row 0 = sum(y), row 1 = sum(y*y), rows 2..7 = 0
    """
    y = jnp.dot(p_ref[...], w_ref[...], preferred_element_type=jnp.float32)
    s = jnp.sum(y, axis=0, keepdims=True)
    q = jnp.sum(y * y, axis=0, keepdims=True)
    row = lax.broadcasted_iota(jnp.int32, (8, y.shape[1]), 0)
    # Single full-block store (no masked partial vst sequences).
    stats_ref[...] = jnp.where(row == 0, s, jnp.where(row == 1, q, 0.0))


def _conv_bn_relu_pool_kernel(p_ref, w_ref, scale_ref, shift_ref, out_ref, *, tm):
    """Pass B (tiled): recompute conv matmul, BN affine + ReLU + 2x2 max-pool.

    Recomputing the dot (MXU slack at small K) is cheaper than writing and
    re-reading the pre-BN activations through HBM.  Epilogue stays f32.
    """
    y = jnp.dot(p_ref[...], w_ref[...], preferred_element_type=jnp.float32)
    z = jnp.maximum(y * scale_ref[...] + shift_ref[...], 0.0)
    pooled = z[0:tm]                        # init from pool member 0
    for p in range(1, 4):
        pooled = jnp.maximum(pooled, z[p * tm:(p + 1) * tm])
    out_ref[...] = pooled


def _fused_conv_bn_relu_pool_kernel(p_ref, w_ref, gamma_ref, beta_ref, out_ref,
                                    *, tm, inv_n):
    """Single-tile fast path: conv + BN(batch stats) + ReLU + pool, one call."""
    y = jnp.dot(p_ref[...], w_ref[...], preferred_element_type=jnp.float32)
    s = jnp.sum(y, axis=0, keepdims=True)
    q = jnp.sum(y * y, axis=0, keepdims=True)
    mean = s * inv_n
    var = jnp.maximum(q * inv_n - mean * mean, 0.0)     # clamp: cancellation-safe
    scale = lax.rsqrt(var + BN_EPS) * gamma_ref[...]
    shift = beta_ref[...] - mean * scale
    z = jnp.maximum(y * scale + shift, 0.0)
    pooled = z[0:tm]
    for p in range(1, 4):
        pooled = jnp.maximum(pooled, z[p * tm:(p + 1) * tm])
    out_ref[...] = pooled


def _fc_kernel(x_ref, w1_ref, b1_ref, w2_ref, b2_ref, out_ref):
    """Linear -> ReLU -> Linear.  Hidden lane-dense (128); final weight padded
    only to the sublane multiple actually needed (8 output lanes)."""
    h = jnp.dot(x_ref[...], w1_ref[...],
                preferred_element_type=jnp.float32) + b1_ref[...]
    h = jnp.maximum(h, 0.0)
    out_ref[...] = jnp.dot(h, w2_ref[...],
                           preferred_element_type=jnp.float32) + b2_ref[...]


# ---------------------------------------------------------------------------
# Wrappers
# ---------------------------------------------------------------------------
def _round_up(x, m):
    return (x + m - 1) // m * m


def _pick_tile(m, k, *, max_rows=512, min_tiles=1):
    """Pooled rows per tile (TM) and padded M.

    max_rows=512 keeps the ~0.35us per-grid-step overhead negligible; the VMEM
    cap is re-derived from the per-row footprint (double-buffered bf16 patch
    block of 4*K per pooled row + f32 out) against a 32 MiB working budget,
    which fits v7x's 64 MiB/TC physical VMEM with headroom (v5e/v6e: 128 MiB).
    min_tiles >= 2 keeps the 'parallel' grid axis shardable over both v7x TCs.
    """
    m8 = _round_up(m, 8)
    per_row = 2 * (4 * k * 2 + CP * 4)
    vmem_rows = max(8, ((32 << 20) // per_row) // 8 * 8)
    tm = min(max_rows, vmem_rows, m8)
    if min_tiles > 1:
        tm = min(tm, _round_up((m8 + min_tiles - 1) // min_tiles, 8))
    tm = max(8, tm)
    m_pad = _round_up(m8, tm)
    return tm, m_pad


def _pad_cols(a2d, cols):
    out = jnp.zeros((a2d.shape[0], cols), jnp.float32)
    return out.at[:, :a2d.shape[1]].set(a2d)


def _mosaic_params(block_bytes, parallel_dims=0):
    """Explicit VMEM limit: 2x double-buffering of the pipelined blocks plus
    headroom, clamped to v7x's 64 MiB/TC physical budget (safe on all gens)."""
    limit = int(min(max(4 * block_bytes, 32 << 20), 64 << 20))
    if parallel_dims:
        return pltpu.CompilerParams(
            dimension_semantics=("parallel",) * parallel_dims,
            vmem_limit_bytes=limit)
    return pltpu.CompilerParams(vmem_limit_bytes=limit)


def conv_bn_relu_pool_stage(x_nhwc, w_hwio, gamma, beta, *,
                            max_rows=512, min_tiles=1):
    """Conv2d(3x3, valid) + BatchNorm2d(train mode) + ReLU + MaxPool2d(2)."""
    N, H, W, Cin = x_nhwc.shape
    Cout = w_hwio.shape[3]
    Ho, Wo = H - 2, W - 2
    # TODO(synk): odd conv outputs would need the pool-cropped rows included in
    # the BN statistics; RelationLayer's design sizes (18->16->8->6->3) are even.
    assert Ho % 2 == 0 and Wo % 2 == 0, (Ho, Wo)
    Hp, Wp = Ho // 2, Wo // 2
    M = N * Hp * Wp
    K = 9 * Cin
    TM, M_pad = _pick_tile(M, K, max_rows=max_rows, min_tiles=min_tiles)
    nt = M_pad // TM
    inv_n = 1.0 / float(4 * M)     # true BN count = N*Ho*Wo; zero-pad rows add 0

    # im2col grouped by 2x2 pool member, tile-major row order so each grid step
    # sees one contiguous (4*TM, K) block; staged in bf16 (f32 accumulation
    # in-kernel).  TODO(synk): in-kernel shifted-slice accumulation at prod sizes.
    xb = x_nhwc.astype(jnp.bfloat16)
    cols = [xb[:, kh:kh + Ho, kw:kw + Wo, :]
            for kh in range(3) for kw in range(3)]
    p = jnp.stack(cols, axis=3).reshape(N, Ho, Wo, K)
    p = p.reshape(N, Hp, 2, Wp, 2, K).transpose(2, 4, 0, 1, 3, 5).reshape(4, M, K)
    p = jnp.pad(p, ((0, 0), (0, M_pad - M), (0, 0)))
    p = p.reshape(4, nt, TM, K).transpose(1, 0, 2, 3).reshape(nt * 4 * TM, K)

    # Lane-dense channel padding: Cout -> 128; weights staged in bf16.
    w2d = _pad_cols(w_hwio.reshape(K, Cout), CP).astype(jnp.bfloat16)
    g2d = _pad_cols(gamma.reshape(1, Cout), CP)
    b2d = _pad_cols(beta.reshape(1, Cout), CP)

    if nt == 1:
        # Fused single-tile path: activations never leave VMEM pre-BN.
        blk = 4 * M_pad * K * 2 + K * CP * 2 + 2 * CP * 4 + M_pad * CP * 4
        pooled = pl.pallas_call(
            functools.partial(_fused_conv_bn_relu_pool_kernel,
                              tm=TM, inv_n=inv_n),
            out_shape=jax.ShapeDtypeStruct((M_pad, CP), jnp.float32),
            in_specs=[pl.BlockSpec(memory_space=pltpu.MemorySpace.VMEM)] * 4,
            out_specs=pl.BlockSpec(memory_space=pltpu.MemorySpace.VMEM),
            compiler_params=_mosaic_params(blk),
        )(p, w2d, g2d, b2d)
    else:
        # Pass A: conv + per-tile BN partial sums only (no pre-BN HBM output).
        # (If DMA stays exposed on v5e, sweep pipeline_mode=pl.Buffered(3) on p.)
        blk_a = 4 * TM * K * 2 + K * CP * 2 + 8 * CP * 4
        part = pl.pallas_call(
            _conv_stats_kernel,
            grid=(nt,),
            in_specs=[pl.BlockSpec((4 * TM, K), lambda i: (i, 0)),
                      pl.BlockSpec((K, CP), lambda i: (0, 0))],
            out_specs=pl.BlockSpec((8, CP), lambda i: (i, 0)),
            out_shape=jax.ShapeDtypeStruct((nt * 8, CP), jnp.float32),
            compiler_params=_mosaic_params(blk_a, parallel_dims=1),
        )(p, w2d)

        # Tiny cross-tile reduction + BN scale/shift, computed ONCE in XLA.
        stats = part.reshape(nt, 8, CP).sum(axis=0)
        mean = stats[0] * inv_n
        var = jnp.maximum(stats[1] * inv_n - mean * mean, 0.0)
        scale_v = lax.rsqrt(var + BN_EPS) * g2d[0]
        shift_v = b2d[0] - mean * scale_v
        scale2d = scale_v.reshape(1, CP)
        shift2d = shift_v.reshape(1, CP)

        # Pass B: recompute conv tile, apply scale/shift + ReLU + 2x2 max-pool.
        blk_b = 4 * TM * K * 2 + K * CP * 2 + 2 * CP * 4 + TM * CP * 4
        pooled = pl.pallas_call(
            functools.partial(_conv_bn_relu_pool_kernel, tm=TM),
            grid=(nt,),
            in_specs=[pl.BlockSpec((4 * TM, K), lambda i: (i, 0)),
                      pl.BlockSpec((K, CP), lambda i: (0, 0)),
                      pl.BlockSpec((1, CP), lambda i: (0, 0)),
                      pl.BlockSpec((1, CP), lambda i: (0, 0))],
            out_specs=pl.BlockSpec((TM, CP), lambda i: (i, 0)),
            out_shape=jax.ShapeDtypeStruct((M_pad, CP), jnp.float32),
            compiler_params=_mosaic_params(blk_b, parallel_dims=1),
        )(p, w2d, scale2d, shift2d)

    return pooled[:M, :Cout].reshape(N, Hp, Wp, Cout)


def fc_head(x, w1, b1, w2, b2):
    """Linear(72,8) -> ReLU -> Linear(8,1) with minimal padding."""
    N, k1 = x.shape
    h1, c2 = w1.shape[1], w2.shape[1]
    n_pad = _round_up(max(N, 8), 8)           # sublane-aligned batch rows
    c2p = _round_up(c2, 8)                    # only the padding actually needed
    xp = jnp.zeros((n_pad, k1), jnp.float32).at[:N].set(x)
    w1p = _pad_cols(w1, CP)                                    # hidden lane-dense
    b1p = _pad_cols(b1.reshape(1, h1), CP)
    w2p = jnp.zeros((CP, c2p), jnp.float32).at[:h1, :c2].set(w2)
    b2p = jnp.zeros((1, c2p), jnp.float32).at[:, :c2].set(b2.reshape(1, c2))
    out = pl.pallas_call(
        _fc_kernel,
        out_shape=jax.ShapeDtypeStruct((n_pad, c2p), jnp.float32),
        in_specs=[pl.BlockSpec(memory_space=pltpu.MemorySpace.VMEM)] * 5,
        out_specs=pl.BlockSpec(memory_space=pltpu.MemorySpace.VMEM),
        compiler_params=_mosaic_params(
            n_pad * k1 * 4 + (k1 + c2p) * CP * 4 + n_pad * c2p * 4),
    )(xp, w1p, b1p, w2p, b2p)
    return out[:N, :c2]


def relation_layer_forward(x_nchw, params):
    N = x_nchw.shape[0]
    x = jnp.transpose(x_nchw, (0, 2, 3, 1)).astype(jnp.float32)   # NHWC
    # Conv bias (params b1/b2) intentionally NOT passed: it cancels exactly
    # under training-mode BatchNorm.
    # Stage 1: tiled two-pass path; min_tiles=2 guarantees >=2 'parallel' grid
    # steps (both v7x TensorCores busy).  At production sizes the 512-row tile
    # cap yields a multi-step grid on its own.
    f1 = conv_bn_relu_pool_stage(x, params["w1"], params["g1"], params["be1"],
                                 min_tiles=2)
    # Stage 2: tiny after pooling -> single-tile fused path (no HBM re-read).
    f2 = conv_bn_relu_pool_stage(f1, params["w2"], params["g2"], params["be2"])
    # Flatten exactly like PyTorch: NCHW .view(N, -1).
    flat = jnp.transpose(f2, (0, 3, 1, 2)).reshape(N, -1)
    return fc_head(flat, params["wf1"], params["bf1"],
                   params["wf2"], params["bf2"])


# ---------------------------------------------------------------------------
# Pure-JAX reference (PyTorch semantics, f32, training-mode BN, with conv bias)
# ---------------------------------------------------------------------------
def relation_layer_reference(x_nchw, params):
    x = x_nchw.astype(jnp.float32)

    def conv(x, w_hwio, b_1c):
        w_oihw = jnp.transpose(w_hwio, (3, 2, 0, 1))
        y = lax.conv_general_dilated(
            x, w_oihw, window_strides=(1, 1), padding="VALID",
            dimension_numbers=("NCHW", "OIHW", "NCHW"),
            precision=lax.Precision.HIGHEST)
        return y + b_1c.reshape(1, -1, 1, 1)

    def bn_relu(y, g_1c, be_1c):
        mean = jnp.mean(y, axis=(0, 2, 3), keepdims=True)
        var = jnp.mean((y - mean) ** 2, axis=(0, 2, 3), keepdims=True)
        z = (y - mean) * lax.rsqrt(var + BN_EPS)
        z = z * g_1c.reshape(1, -1, 1, 1) + be_1c.reshape(1, -1, 1, 1)
        return jnp.maximum(z, 0.0)

    def pool(y):
        return lax.reduce_window(y, -jnp.inf, lax.max,
                                 (1, 1, 2, 2), (1, 1, 2, 2), "VALID")

    y = pool(bn_relu(conv(x, params["w1"], params["b1"]),
                     params["g1"], params["be1"]))
    y = pool(bn_relu(conv(y, params["w2"], params["b2"]),
                     params["g2"], params["be2"]))
    flat = y.reshape(y.shape[0], -1)
    h = jnp.maximum(flat @ params["wf1"] + params["bf1"], 0.0)
    return h @ params["wf2"] + params["bf2"]


# ---------------------------------------------------------------------------
# Main
# ---------------------------------------------------------------------------
if __name__ == "__main__":
    # Small self-consistent shapes: feat_dim=8, feat_height=feat_width=3.
    # Spatial 18 -> conv3 -> 16 -> pool -> 8 -> conv3 -> 6 -> pool -> 3.
    FEAT_DIM, FEAT_HW = 8, 3
    N, CIN, H, W = 2, 2 * FEAT_DIM, 18, 18

    kx = jax.random.PRNGKey(0)
    x = jax.random.normal(kx, (N, CIN, H, W), dtype=jnp.float32)

    ks = jax.random.split(jax.random.PRNGKey(1), 10)
    params = {
        # conv weights stored as (kh, kw, cin, cout)
        "w1": 0.1 * jax.random.normal(ks[0], (3, 3, CIN, FEAT_DIM), jnp.float32),
        "b1": 0.05 * jax.random.normal(ks[1], (1, FEAT_DIM), jnp.float32),
        "g1": 1.0 + 0.1 * jax.random.normal(ks[2], (1, FEAT_DIM), jnp.float32),
        "be1": 0.05 * jax.random.normal(ks[3], (1, FEAT_DIM), jnp.float32),
        "w2": 0.1 * jax.random.normal(ks[4], (3, 3, FEAT_DIM, FEAT_DIM), jnp.float32),
        "b2": 0.05 * jax.random.normal(ks[5], (1, FEAT_DIM), jnp.float32),
        "g2": 1.0 + 0.1 * jax.random.normal(ks[6], (1, FEAT_DIM), jnp.float32),
        "be2": 0.05 * jax.random.normal(ks[7], (1, FEAT_DIM), jnp.float32),
        "wf1": 0.1 * jax.random.normal(ks[8], (FEAT_DIM * FEAT_HW * FEAT_HW, 8),
                                       jnp.float32),
        "bf1": jnp.zeros((1, 8), jnp.float32),
        "wf2": 0.1 * jax.random.normal(ks[9], (8, 1), jnp.float32),
        "bf2": jnp.zeros((1, 1), jnp.float32),
    }

    fwd = jax.jit(lambda xx: relation_layer_forward(xx, params))
    out = fwd(x)
    jax.block_until_ready(out)
    assert out.shape == (N, 1), out.shape

    ref = relation_layer_reference(x, params)
    jax.block_until_ready(ref)
    # Kernel matmuls run with bf16-staged operands (f32 accumulation) vs the
    # HIGHEST-precision f32 reference -> tolerance relaxed accordingly.
    assert jnp.allclose(out, ref, atol=3e-2, rtol=3e-2), (out, ref)

    print("KERNEL_OK")
</pallas_src>

<mosaic_0001>
module attributes {stable_mosaic.version = 11 : i64} {
  func.func @_conv_stats_kernel(%arg0: i32, %arg1: memref<256x144xbf16, #tpu.memory_space<vmem>>, %arg2: memref<144x128xbf16, #tpu.memory_space<vmem>>, %arg3: memref<8x128xf32, #tpu.memory_space<vmem>>) attributes {dimension_semantics = [#tpu.dimension_semantics<parallel>], iteration_bounds = array<i64: 2>, scalar_prefetch = 0 : i64, scratch_operands = 0 : i64, tpu.core_type = #tpu.core_type<tc>, window_params = [{transform_indices = @transform_0, window_bounds = array<i64: 256, 144>}, {pipeline_mode = #tpu.pipeline_mode<synchronous>, transform_indices = @transform_1, window_bounds = array<i64: 144, 128>}, {transform_indices = @transform_2, window_bounds = array<i64: 8, 128>}]} {
    %c0 = arith.constant 0 : index
    %c0_0 = arith.constant 0 : index
    %0 = vector.load %arg1[%c0, %c0_0] : memref<256x144xbf16, #tpu.memory_space<vmem>>, vector<256x144xbf16>
    %c0_1 = arith.constant 0 : index
    %c0_2 = arith.constant 0 : index
    %1 = vector.load %arg2[%c0_1, %c0_2] : memref<144x128xbf16, #tpu.memory_space<vmem>>, vector<144x128xbf16>
    %cst = arith.constant dense<0.000000e+00> : vector<256x128xf32>
    %2 = tpu.matmul %0, %1, %cst {dimension_numbers = #tpu.dot_dimension_numbers<[1], [0], [0], [1], [0, 0, 1, 1], [], []>} : vector<256x144xbf16>, vector<144x128xbf16>, vector<256x128xf32> -> vector<256x128xf32>
    %cst_3 = arith.constant dense<0.000000e+00> : vector<128xf32>
    %3 = vector.multi_reduction <add>, %2, %cst_3 [0] : vector<256x128xf32> to vector<128xf32>
    %4 = vector.shape_cast %3 : vector<128xf32> to vector<1x128xf32>
    %5 = arith.mulf %2, %2 : vector<256x128xf32>
    %cst_4 = arith.constant dense<0.000000e+00> : vector<128xf32>
    %6 = vector.multi_reduction <add>, %5, %cst_4 [0] : vector<256x128xf32> to vector<128xf32>
    %7 = vector.shape_cast %6 : vector<128xf32> to vector<1x128xf32>
    %8 = tpu.iota {dimensions = array<i32: 0>} : vector<8x128xi32>
    %c0_i32 = arith.constant 0 : i32
    %9 = vector.broadcast %c0_i32 : i32 to vector<8x128xi32>
    %10 = arith.cmpi eq, %8, %9 : vector<8x128xi32>
    %c1_i32 = arith.constant 1 : i32
    %11 = vector.broadcast %c1_i32 : i32 to vector<8x128xi32>
    %12 = arith.cmpi eq, %8, %11 : vector<8x128xi32>
    %cst_5 = arith.constant 0.000000e+00 : f32
    %13 = vector.shape_cast %7 : vector<1x128xf32> to vector<1x128xf32>
    %14 = vector.broadcast %13 : vector<1x128xf32> to vector<8x128xf32>
    %15 = vector.broadcast %cst_5 : f32 to vector<8x128xf32>
    %16 = arith.select %12, %14, %15 : vector<8x128xi1>, vector<8x128xf32>
    %17 = vector.shape_cast %4 : vector<1x128xf32> to vector<1x128xf32>
    %18 = vector.broadcast %17 : vector<1x128xf32> to vector<8x128xf32>
    %19 = arith.select %10, %18, %16 : vector<8x128xi1>, vector<8x128xf32>
    %c0_6 = arith.constant 0 : index
    %c0_7 = arith.constant 0 : index
    %20 = vector.load %arg3[%c0_6, %c0_7] : memref<8x128xf32, #tpu.memory_space<vmem>>, vector<8x128xf32>
    tpu.vector_store %arg3[%c0_6, %c0_7], %19 {strides = array<i32>} : memref<8x128xf32, #tpu.memory_space<vmem>>, vector<8x128xf32>,
    return
  }
  func.func @transform_0(%arg0: i32) -> (i32, i32) {
    %c0_i32 = arith.constant 0 : i32
    %c0_i32_0 = arith.constant 0 : i32
    return %arg0, %c0_i32 : i32, i32
  }
  func.func @transform_1(%arg0: i32) -> (i32, i32) {
    %c0_i32 = arith.constant 0 : i32
    %c0_i32_0 = arith.constant 0 : i32
    %c0_i32_1 = arith.constant 0 : i32
    return %c0_i32, %c0_i32_0 : i32, i32
  }
  func.func @transform_2(%arg0: i32) -> (i32, i32) {
    %c0_i32 = arith.constant 0 : i32
    %c0_i32_0 = arith.constant 0 : i32
    return %arg0, %c0_i32 : i32, i32
  }
}

module attributes {stable_mosaic.version = 11 : i64} {
  func.func @_conv_bn_relu_pool_kernel(%arg0: i32, %arg1: memref<256x144xbf16, #tpu.memory_space<vmem>>, %arg2: memref<144x128xbf16, #tpu.memory_space<vmem>>, %arg3: memref<1x128xf32, #tpu.memory_space<vmem>>, %arg4: memref<1x128xf32, #tpu.memory_space<vmem>>, %arg5: memref<64x128xf32, #tpu.memory_space<vmem>>) attributes {dimension_semantics = [#tpu.dimension_semantics<parallel>], iteration_bounds = array<i64: 2>, scalar_prefetch = 0 : i64, scratch_operands = 0 : i64, tpu.core_type = #tpu.core_type<tc>, window_params = [{transform_indices = @transform_0, window_bounds = array<i64: 256, 144>}, {pipeline_mode = #tpu.pipeline_mode<synchronous>, transform_indices = @transform_1, window_bounds = array<i64: 144, 128>}, {pipeline_mode = #tpu.pipeline_mode<synchronous>, transform_indices = @transform_2, window_bounds = array<i64: 1, 128>}, {pipeline_mode = #tpu.pipeline_mode<synchronous>, transform_indices = @transform_3, window_bounds = array<i64: 1, 128>}, {transform_indices = @transform_4, window_bounds = array<i64: 64, 128>}]} {
    %c0 = arith.constant 0 : index
    %c0_0 = arith.constant 0 : index
    %0 = vector.load %arg1[%c0, %c0_0] : memref<256x144xbf16, #tpu.memory_space<vmem>>, vector<256x144xbf16>
    %c0_1 = arith.constant 0 : index
    %c0_2 = arith.constant 0 : index
    %1 = vector.load %arg2[%c0_1, %c0_2] : memref<144x128xbf16, #tpu.memory_space<vmem>>, vector<144x128xbf16>
    %cst = arith.constant dense<0.000000e+00> : vector<256x128xf32>
    %2 = tpu.matmul %0, %1, %cst {dimension_numbers = #tpu.dot_dimension_numbers<[1], [0], [0], [1], [0, 0, 1, 1], [], []>} : vector<256x144xbf16>, vector<144x128xbf16>, vector<256x128xf32> -> vector<256x128xf32>
    %c0_3 = arith.constant 0 : index
    %c0_4 = arith.constant 0 : index
    %3 = vector.load %arg3[%c0_3, %c0_4] : memref<1x128xf32, #tpu.memory_space<vmem>>, vector<1x128xf32>
    %4 = vector.broadcast %3 : vector<1x128xf32> to vector<256x128xf32>
    %5 = arith.mulf %2, %4 : vector<256x128xf32>
    %c0_5 = arith.constant 0 : index
    %c0_6 = arith.constant 0 : index
    %6 = vector.load %arg4[%c0_5, %c0_6] : memref<1x128xf32, #tpu.memory_space<vmem>>, vector<1x128xf32>
    %7 = vector.broadcast %6 : vector<1x128xf32> to vector<256x128xf32>
    %8 = arith.addf %5, %7 : vector<256x128xf32>
    %cst_7 = arith.constant 0.000000e+00 : f32
    %9 = vector.broadcast %cst_7 : f32 to vector<256x128xf32>
    %10 = arith.maximumf %8, %9 : vector<256x128xf32>
    %11 = vector.extract_strided_slice %10 {offsets = [0, 0], sizes = [64, 128], strides = [1, 1]} : vector<256x128xf32> to vector<64x128xf32>
    %12 = vector.extract_strided_slice %10 {offsets = [64, 0], sizes = [64, 128], strides = [1, 1]} : vector<256x128xf32> to vector<64x128xf32>
    %13 = arith.maximumf %11, %12 : vector<64x128xf32>
    %14 = vector.extract_strided_slice %10 {offsets = [128, 0], sizes = [64, 128], strides = [1, 1]} : vector<256x128xf32> to vector<64x128xf32>
    %15 = arith.maximumf %13, %14 : vector<64x128xf32>
    %16 = vector.extract_strided_slice %10 {offsets = [192, 0], sizes = [64, 128], strides = [1, 1]} : vector<256x128xf32> to vector<64x128xf32>
    %17 = arith.maximumf %15, %16 : vector<64x128xf32>
    %c0_8 = arith.constant 0 : index
    %c0_9 = arith.constant 0 : index
    %18 = vector.load %arg5[%c0_8, %c0_9] : memref<64x128xf32, #tpu.memory_space<vmem>>, vector<64x128xf32>
    tpu.vector_store %arg5[%c0_8, %c0_9], %17 {strides = array<i32>} : memref<64x128xf32, #tpu.memory_space<vmem>>, vector<64x128xf32>,
    return
  }
  func.func @transform_0(%arg0: i32) -> (i32, i32) {
    %c0_i32 = arith.constant 0 : i32
    %c0_i32_0 = arith.constant 0 : i32
    return %arg0, %c0_i32 : i32, i32
  }
  func.func @transform_1(%arg0: i32) -> (i32, i32) {
    %c0_i32 = arith.constant 0 : i32
    %c0_i32_0 = arith.constant 0 : i32
    %c0_i32_1 = arith.constant 0 : i32
    return %c0_i32, %c0_i32_0 : i32, i32
  }
  func.func @transform_2(%arg0: i32) -> (i32, i32) {
    %c0_i32 = arith.constant 0 : i32
    %c0_i32_0 = arith.constant 0 : i32
    %c0_i32_1 = arith.constant 0 : i32
    return %c0_i32, %c0_i32_0 : i32, i32
  }
  func.func @transform_3(%arg0: i32) -> (i32, i32) {
    %c0_i32 = arith.constant 0 : i32
    %c0_i32_0 = arith.constant 0 : i32
    %c0_i32_1 = arith.constant 0 : i32
    return %c0_i32, %c0_i32_0 : i32, i32
  }
  func.func @transform_4(%arg0: i32) -> (i32, i32) {
    %c0_i32 = arith.constant 0 : i32
    %c0_i32_0 = arith.constant 0 : i32
    return %arg0, %c0_i32 : i32, i32
  }
}

module attributes {stable_mosaic.version = 11 : i64} {
  func.func @_fused_conv_bn_relu_pool_kernel(%arg0: memref<96x72xbf16, #tpu.memory_space<vmem>>, %arg1: memref<72x128xbf16, #tpu.memory_space<vmem>>, %arg2: memref<1x128xf32, #tpu.memory_space<vmem>>, %arg3: memref<1x128xf32, #tpu.memory_space<vmem>>, %arg4: memref<24x128xf32, #tpu.memory_space<vmem>>) attributes {dimension_semantics = [], scalar_prefetch = 0 : i64, scratch_operands = 0 : i64, tpu.core_type = #tpu.core_type<tc>} {
    %c0 = arith.constant 0 : index
    %c0_0 = arith.constant 0 : index
    %0 = vector.load %arg0[%c0, %c0_0] : memref<96x72xbf16, #tpu.memory_space<vmem>>, vector<96x72xbf16>
    %c0_1 = arith.constant 0 : index
    %c0_2 = arith.constant 0 : index
    %1 = vector.load %arg1[%c0_1, %c0_2] : memref<72x128xbf16, #tpu.memory_space<vmem>>, vector<72x128xbf16>
    %cst = arith.constant dense<0.000000e+00> : vector<96x128xf32>
    %2 = tpu.matmul %0, %1, %cst {dimension_numbers = #tpu.dot_dimension_numbers<[1], [0], [0], [1], [0, 0, 1, 1], [], []>} : vector<96x72xbf16>, vector<72x128xbf16>, vector<96x128xf32> -> vector<96x128xf32>
    %cst_3 = arith.constant dense<0.000000e+00> : vector<128xf32>
    %3 = vector.multi_reduction <add>, %2, %cst_3 [0] : vector<96x128xf32> to vector<128xf32>
    %4 = vector.shape_cast %3 : vector<128xf32> to vector<1x128xf32>
    %5 = arith.mulf %2, %2 : vector<96x128xf32>
    %cst_4 = arith.constant dense<0.000000e+00> : vector<128xf32>
    %6 = vector.multi_reduction <add>, %5, %cst_4 [0] : vector<96x128xf32> to vector<128xf32>
    %7 = vector.shape_cast %6 : vector<128xf32> to vector<1x128xf32>
    %cst_5 = arith.constant 0.013888889 : f32
    %8 = vector.broadcast %cst_5 : f32 to vector<1x128xf32>
    %9 = arith.mulf %4, %8 : vector<1x128xf32>
    %cst_6 = arith.constant 0.013888889 : f32
    %10 = vector.broadcast %cst_6 : f32 to vector<1x128xf32>
    %11 = arith.mulf %7, %10 : vector<1x128xf32>
    %12 = arith.mulf %9, %9 : vector<1x128xf32>
    %13 = arith.subf %11, %12 : vector<1x128xf32>
    %cst_7 = arith.constant 0.000000e+00 : f32
    %14 = vector.broadcast %cst_7 : f32 to vector<1x128xf32>
    %15 = arith.maximumf %13, %14 : vector<1x128xf32>
    %cst_8 = arith.constant 9.99999974E-6 : f32
    %16 = vector.broadcast %cst_8 : f32 to vector<1x128xf32>
    %17 = arith.addf %15, %16 : vector<1x128xf32>
    %18 = math.rsqrt %17 : vector<1x128xf32>
    %c0_9 = arith.constant 0 : index
    %c0_10 = arith.constant 0 : index
    %19 = vector.load %arg2[%c0_9, %c0_10] : memref<1x128xf32, #tpu.memory_space<vmem>>, vector<1x128xf32>
    %20 = arith.mulf %18, %19 : vector<1x128xf32>
    %c0_11 = arith.constant 0 : index
    %c0_12 = arith.constant 0 : index
    %21 = vector.load %arg3[%c0_11, %c0_12] : memref<1x128xf32, #tpu.memory_space<vmem>>, vector<1x128xf32>
    %22 = arith.mulf %9, %20 : vector<1x128xf32>
    %23 = arith.subf %21, %22 : vector<1x128xf32>
    %24 = vector.broadcast %20 : vector<1x128xf32> to vector<96x128xf32>
    %25 = arith.mulf %2, %24 : vector<96x128xf32>
    %26 = vector.broadcast %23 : vector<1x128xf32> to vector<96x128xf32>
    %27 = arith.addf %25, %26 : vector<96x128xf32>
    %cst_13 = arith.constant 0.000000e+00 : f32
    %28 = vector.broadcast %cst_13 : f32 to vector<96x128xf32>
    %29 = arith.maximumf %27, %28 : vector<96x128xf32>
    %30 = vector.extract_strided_slice %29 {offsets = [0, 0], sizes = [24, 128], strides = [1, 1]} : vector<96x128xf32> to vector<24x128xf32>
    %31 = vector.extract_strided_slice %29 {offsets = [24, 0], sizes = [24, 128], strides = [1, 1]} : vector<96x128xf32> to vector<24x128xf32>
    %32 = arith.maximumf %30, %31 : vector<24x128xf32>
    %33 = vector.extract_strided_slice %29 {offsets = [48, 0], sizes = [24, 128], strides = [1, 1]} : vector<96x128xf32> to vector<24x128xf32>
    %34 = arith.maximumf %32, %33 : vector<24x128xf32>
    %35 = vector.extract_strided_slice %29 {offsets = [72, 0], sizes = [24, 128], strides = [1, 1]} : vector<96x128xf32> to vector<24x128xf32>
    %36 = arith.maximumf %34, %35 : vector<24x128xf32>
    %c0_14 = arith.constant 0 : index
    %c0_15 = arith.constant 0 : index
    %37 = vector.load %arg4[%c0_14, %c0_15] : memref<24x128xf32, #tpu.memory_space<vmem>>, vector<24x128xf32>
    tpu.vector_store %arg4[%c0_14, %c0_15], %36 {strides = array<i32>} : memref<24x128xf32, #tpu.memory_space<vmem>>, vector<24x128xf32>,
    return
  }
}

module attributes {stable_mosaic.version = 11 : i64} {
  func.func @_fc_kernel(%arg0: memref<8x72xf32, #tpu.memory_space<vmem>>, %arg1: memref<72x128xf32, #tpu.memory_space<vmem>>, %arg2: memref<1x128xf32, #tpu.memory_space<vmem>>, %arg3: memref<128x8xf32, #tpu.memory_space<vmem>>, %arg4: memref<1x8xf32, #tpu.memory_space<vmem>>, %arg5: memref<8x8xf32, #tpu.memory_space<vmem>>) attributes {dimension_semantics = [], scalar_prefetch = 0 : i64, scratch_operands = 0 : i64, tpu.core_type = #tpu.core_type<tc>} {
    %c0 = arith.constant 0 : index
    %c0_0 = arith.constant 0 : index
    %0 = vector.load %arg0[%c0, %c0_0] : memref<8x72xf32, #tpu.memory_space<vmem>>, vector<8x72xf32>
    %c0_1 = arith.constant 0 : index
    %c0_2 = arith.constant 0 : index
    %1 = vector.load %arg1[%c0_1, %c0_2] : memref<72x128xf32, #tpu.memory_space<vmem>>, vector<72x128xf32>
    %cst = arith.constant dense<0.000000e+00> : vector<8x128xf32>
    %2 = tpu.matmul %0, %1, %cst {dimension_numbers = #tpu.dot_dimension_numbers<[1], [0], [0], [1], [0, 0, 1, 1], [], []>} : vector<8x72xf32>, vector<72x128xf32>, vector<8x128xf32> -> vector<8x128xf32>
    %c0_3 = arith.constant 0 : index
    %c0_4 = arith.constant 0 : index
    %3 = vector.load %arg2[%c0_3, %c0_4] : memref<1x128xf32, #tpu.memory_space<vmem>>, vector<1x128xf32>
    %4 = vector.broadcast %3 : vector<1x128xf32> to vector<8x128xf32>
    %5 = arith.addf %2, %4 : vector<8x128xf32>
    %cst_5 = arith.constant 0.000000e+00 : f32
    %6 = vector.broadcast %cst_5 : f32 to vector<8x128xf32>
    %7 = arith.maximumf %5, %6 : vector<8x128xf32>
    %c0_6 = arith.constant 0 : index
    %c0_7 = arith.constant 0 : index
    %8 = vector.load %arg3[%c0_6, %c0_7] : memref<128x8xf32, #tpu.memory_space<vmem>>, vector<128x8xf32>
    %cst_8 = arith.constant dense<0.000000e+00> : vector<8x8xf32>
    %9 = tpu.matmul %7, %8, %cst_8 {dimension_numbers = #tpu.dot_dimension_numbers<[1], [0], [0], [1], [0, 0, 1, 1], [], []>} : vector<8x128xf32>, vector<128x8xf32>, vector<8x8xf32> -> vector<8x8xf32>
    %c0_9 = arith.constant 0 : index
    %c0_10 = arith.constant 0 : index
    %10 = vector.load %arg4[%c0_9, %c0_10] : memref<1x8xf32, #tpu.memory_space<vmem>>, vector<1x8xf32>
    %11 = vector.broadcast %10 : vector<1x8xf32> to vector<8x8xf32>
    %12 = arith.addf %9, %11 : vector<8x8xf32>
    %c0_11 = arith.constant 0 : index
    %c0_12 = arith.constant 0 : index
    %13 = vector.load %arg5[%c0_11, %c0_12] : memref<8x8xf32, #tpu.memory_space<vmem>>, vector<8x8xf32>
    tpu.vector_store %arg5[%c0_11, %c0_12], %12 {strides = array<i32>} : memref<8x8xf32, #tpu.memory_space<vmem>>, vector<8x8xf32>,
    return
  }
}

</mosaic_0001>

<llo_original>
// kernel: _lambda_.4
$region0: #{_lambda_.4}
  #allocation0 [shape = 'u32[]', space=smem, size = 0x4, offset = 0x4, fixed_abs, tag = 'smem constant byte address 0x4 - core index']
  #allocation1 [shape = 'u32[144,128]{1,0:T(1,128)}', space=vmem, size = 0x12000, scoped, tag = 'internal scratch']
  %s0 = inlined_call_operand.vmem [shape: bf16[512,144], index: 0, kind: input, shape index: {}]
  %s1 = inlined_call_operand.vmem [shape: bf16[144,128], index: 1, kind: input, shape index: {}]
  %s2 = inlined_call_operand.vmem [shape: f32[16,128], index: 2, kind: output, shape index: {}]
  %s3 = sld [smem:[#allocation0]]
  $region41: #{_lambda_.4} parent=0
    _
  %s5 = ssub.s32 1, %s3
  %s6 = scalar_select 0, %s5, %s3
  loop: start=0, step=1, limit=4
  $region2: #{_lambda_.4} parent=0 // loop_pre_header
    _
  $region3: #{_lambda_.4} parent=0 // loop_header
    %s8 = sphi 0, %s12
    %p9 = scmp.ge.s32.totalorder %s8, 4
    %s18 = sphi 0, %s20
    %s21 = sphi 0, %s18
    %s22 = sphi 0, %s21
    %s38 = sphi 0, %s22
    %s42 = sphi 0, %s42
    %s44 = sphi 0, %s42
    %s45 = sphi 0, %s44
    %s59 = sphi 0, %s45
    %s65 = sphi 0, %s67
    %s68 = sphi 0, %s65
    %s69 = sphi 0, %s68
    %s85 = sphi 0, %s69
  $region4: #{_lambda_.4} parent=0 // loop_header_branch
    %11 = sbr.rel (%p9) target = $region8
  $region5: #{_lambda_.4} parent=0 // loop_body
    %s13 = ssub.s32 %s8, 1
    %s14 = ssub.s32 %s8, 2
    %s15 = sadd.s32 %s8, 1
    %s16 = ssub.s32 %s8, %s15
    %p17 = scmp.eq.s32.totalorder %s16, 0
    %s19 = sadd.s32 %s18, 1
    %s20 = scalar_select %p17, %s18, %s19
    %p23 = pneg %p17
    %p24 = scmp.eq.s32.totalorder %s8, 1
    %p25 = por %p23, %p24
    %p26 = scmp.ne.s32.totalorder %s18, %s21
    %p27 = scmp.eq.s32.totalorder %s8, 0
    %p28 = por %p26, %p27
    %p29 = scmp.ne.s32.totalorder %s18, %s21
    %p30 = scmp.eq.s32.totalorder %s13, 1
    %p31 = por %p29, %p30
    %p32 = scmp.ne.s32.totalorder %s21, %s22
    %p33 = scmp.eq.s32.totalorder %s13, 0
    %p34 = por %p32, %p33
    %p35 = scmp.ne.s32.totalorder %s21, %s22
    %p36 = scmp.eq.s32.totalorder %s14, 1
    %p37 = por %p35, %p36
    %p39 = scmp.ne.s32.totalorder %s22, %s38
    %p40 = scmp.eq.s32.totalorder %s14, 0
    %p41 = por %p39, %p40
    %s43 = sadd.s32 %s42, 1
    %p46 = scmp.eq.s32.totalorder %s8, 1
    %p47 = scmp.ne.s32.totalorder %s42, %s44
    %p48 = scmp.eq.s32.totalorder %s8, 0
    %p49 = por %p47, %p48
    %p50 = scmp.ne.s32.totalorder %s42, %s44
    %p51 = scmp.eq.s32.totalorder %s13, 1
    %p52 = por %p50, %p51
    %p53 = scmp.ne.s32.totalorder %s44, %s45
    %p54 = scmp.eq.s32.totalorder %s13, 0
    %p55 = por %p53, %p54
    %p56 = scmp.ne.s32.totalorder %s44, %s45
    %p57 = scmp.eq.s32.totalorder %s14, 1
    %p58 = por %p56, %p57
    %p60 = scmp.ne.s32.totalorder %s45, %s59
    %p61 = scmp.eq.s32.totalorder %s14, 0
    %p62 = por %p60, %p61
    %s63 = ssub.s32 %s8, %s15
    %p64 = scmp.eq.s32.totalorder %s63, 0
    %s66 = sadd.s32 %s65, 1
    %s67 = scalar_select %p64, %s65, %s66
    %p70 = pneg %p64
    %p71 = scmp.eq.s32.totalorder %s8, 1
    %p72 = por %p70, %p71
    %p73 = scmp.ne.s32.totalorder %s65, %s68
    %p74 = scmp.eq.s32.totalorder %s8, 0
    %p75 = por %p73, %p74
    %p76 = scmp.ne.s32.totalorder %s65, %s68
    %p77 = scmp.eq.s32.totalorder %s13, 1
    %p78 = por %p76, %p77
    %p79 = scmp.ne.s32.totalorder %s68, %s69
    %p80 = scmp.eq.s32.totalorder %s13, 0
    %p81 = por %p79, %p80
    %p82 = scmp.ne.s32.totalorder %s68, %s69
    %p83 = scmp.eq.s32.totalorder %s14, 1
    %p84 = por %p82, %p83
    %p86 = scmp.ne.s32.totalorder %s69, %s85
    %p87 = scmp.eq.s32.totalorder %s14, 0
    %p88 = por %p86, %p87
    %p89 = scmp.le.s32.totalorder 1, %s8
    %p90 = scmp.lt.s32.totalorder %s8, 3
    %p91 = pnand %p89, %p90
    %p92 = pneg %p91
    // Predicated region
    $region9: #{_lambda_.4} parent=5 // pred_check
      _
    $region10: #{_lambda_.4} parent=5 // pred_check_branch
      %94 = sbr.rel (%p91) target = $region12
    $region11: #{_lambda_.4} parent=5 // pred_region
      %s95 = ssub.s32 %s8, 1
      // Predicated region
      $region13: #{_lambda_.4} parent=11 // pred_check
        %p96 = pneg %p55
      $region14: #{_lambda_.4} parent=11 // pred_check_branch
        %98 = sbr.rel (%p96) target = $region16
      $region15: #{_lambda_.4} parent=11 // pred_region
        _
      $region16: #{_lambda_.4} parent=11 // pred_fallthru
        _
    $region12: #{_lambda_.4} parent=5 // pred_fallthru
      _
    %p99 = scmp.lt.s32.totalorder %s8, 2
    // Predicated region
    $region17: #{_lambda_.4} parent=5 // pred_check
      %p100 = pneg %p99
    $region18: #{_lambda_.4} parent=5 // pred_check_branch
      %102 = sbr.rel (%p100) target = $region20
    $region19: #{_lambda_.4} parent=5 // pred_region
      // Predicated region
      $region21: #{_lambda_.4} parent=19 // pred_check
        %p103 = pneg %p28
      $region22: #{_lambda_.4} parent=19 // pred_check_branch
        %105 = sbr.rel (%p103) target = $region24
      $region23: #{_lambda_.4} parent=19 // pred_region
        %s106 = smul.u32 32, %s8
        %p107 = scmp.lt.s32.totalorder %s106, 63
        %s108 = scalar_select %p107, %s106, 63
        %s109 = smul.addr %s108, 2
        %s110 = smul.addr %s109, 4
        %s111 = scalar_lea.vmem %s0, %s110
        %s112 = smul.u32 32, %s8
      $region24: #{_lambda_.4} parent=19 // pred_fallthru
        _
    $region20: #{_lambda_.4} parent=5 // pred_fallthru
      _
    %p113 = scmp.le.s32.totalorder 1, %s8
    %p114 = scmp.lt.s32.totalorder %s8, 3
    %p115 = pnand %p113, %p114
    %p116 = pneg %p115
    // Predicated region
    $region25: #{_lambda_.4} parent=5 // pred_check
      _
    $region26: #{_lambda_.4} parent=5 // pred_check_branch
      %118 = sbr.rel (%p115) target = $region28
    $region27: #{_lambda_.4} parent=5 // pred_region
      %s119 = ssub.s32 %s8, 1
      %s120 = smul.u32 32, %s13
      %p121 = scmp.lt.s32.totalorder %s120, 63
      %s122 = scalar_select %p121, %s120, 63
      %s123 = smul.addr %s122, 2
      %s124 = smul.addr %s123, 4
      %s125 = scalar_lea.vmem %s0, %s124
      %p126 = pneg %p34
      %p127 = pneg %p31
      %p128 = pneg %p55
      %p129 = pneg %p52
      %p130 = pneg %p81
      %p131 = pneg %p78
      %p132 = scmp.lt.s32.totalorder %s13, 1
      %s133 = scalar_select %p132, %s13, 1
      %s134 = smul.addr %s133, 8
      %s135 = scalar_lea.vmem %s2, %s134
      %s136 = smul.u32 32, %s13
      %p137 = scmp.lt.s32.totalorder %s136, 63
      %s138 = scalar_select %p137, %s136, 63
      %s139 = smul.addr %s138, 2
      %s140 = smul.addr %s139, 4
      %s141 = scalar_lea.vmem %s0, %s140
      %s142 = smul.u32 32, %s13
      %p143 = scmp.lt.s32.totalorder %s13, 1
      %s144 = scalar_select %p143, %s13, 1
      %s145 = smul.addr %s144, 8
      %s146 = scalar_lea.vmem %s2, %s145
      %v148 = vld [vmem:[%s141] sm:$0xff]
      %v149 = vld [vmem:[%s141 + $0x8] sm:$0xff]
      %v150 = vld [vmem:[%s141 + $0x10] sm:$0xff]
      %v151 = vld [vmem:[%s141 + $0x18] sm:$0xff]
      %v152 = vld [vmem:[%s141 + $0x20] sm:$0xff]
      %v153 = vld [vmem:[%s141 + $0x28] sm:$0xff]
      %v154 = vld [vmem:[%s141 + $0x30] sm:$0xff]
      %v155 = vld [vmem:[%s141 + $0x38] sm:$0xff]
      %v156 = vld [vmem:[%s141 + $0x40] sm:$0xff]
      %v157 = vld [vmem:[%s141 + $0x48] sm:$0xff]
      %v158 = vld [vmem:[%s141 + $0x50] sm:$0xff]
      %v159 = vld [vmem:[%s141 + $0x58] sm:$0xff]
      %v160 = vld [vmem:[%s141 + $0x60] sm:$0xff]
      %v161 = vld [vmem:[%s141 + $0x68] sm:$0xff]
      %v162 = vld [vmem:[%s141 + $0x70] sm:$0xff]
      %v163 = vld [vmem:[%s141 + $0x78] sm:$0xff]
      %v164 = vld [vmem:[%s141 + $0x80] sm:$0xff]
      %v165 = vld [vmem:[%s141 + $0x88] sm:$0xff]
      %v166 = vld [vmem:[%s141 + $0x90] sm:$0xff]
      %v167 = vld [vmem:[%s141 + $0x98] sm:$0xff]
      %v168 = vld [vmem:[%s141 + $0xa0] sm:$0xff]
      %v169 = vld [vmem:[%s141 + $0xa8] sm:$0xff]
      %v170 = vld [vmem:[%s141 + $0xb0] sm:$0xff]
      %v171 = vld [vmem:[%s141 + $0xb8] sm:$0xff]
      %v172 = vld [vmem:[%s141 + $0xc0] sm:$0xff]
      %v173 = vld [vmem:[%s141 + $0xc8] sm:$0xff]
      %v174 = vld [vmem:[%s141 + $0xd0] sm:$0xff]
      %v175 = vld [vmem:[%s141 + $0xd8] sm:$0xff]
      %v176 = vld [vmem:[%s141 + $0xe0] sm:$0xff]
      %v177 = vld [vmem:[%s141 + $0xe8] sm:$0xff]
      %v178 = vld [vmem:[%s141 + $0xf0] sm:$0xff]
      %v179 = vld [vmem:[%s141 + $0xf8] sm:$0xff]
      %v180 = vld [vmem:[%s1] sm:$0xf]
      %v181 = vld [vmem:[%s1 + $0x4] sm:$0xf]
      %v182 = vld [vmem:[%s1 + $0x8] sm:$0xf]
      %v183 = vld [vmem:[%s1 + $0xc] sm:$0xf]
      %v184 = vld [vmem:[%s1 + $0x10] sm:$0xf]
      %v185 = vld [vmem:[%s1 + $0x14] sm:$0xf]
      %v186 = vld [vmem:[%s1 + $0x18] sm:$0xf]
      %v187 = vld [vmem:[%s1 + $0x1c] sm:$0xf]
      %v188 = vld [vmem:[%s1 + $0x20] sm:$0xf]
      %v189 = vld [vmem:[%s1 + $0x24] sm:$0xf]
      %v190 = vld [vmem:[%s1 + $0x28] sm:$0xf]
      %v191 = vld [vmem:[%s1 + $0x2c] sm:$0xf]
      %v192 = vld [vmem:[%s1 + $0x30] sm:$0xf]
      %v193 = vld [vmem:[%s1 + $0x34] sm:$0xf]
      %v194 = vld [vmem:[%s1 + $0x38] sm:$0xf]
      %v195 = vld [vmem:[%s1 + $0x3c] sm:$0xf]
      %v196 = vld [vmem:[%s1 + $0x40] sm:$0xf]
      %v197 = vld [vmem:[%s1 + $0x44] sm:$0xf]
      %v230 = vunpack.c.l.b16 %v148
      %v231 = vunpack.c.h.b16 %v148
      %v232 = vunpack.c.l.b16 %v149
      %v233 = vunpack.c.h.b16 %v149
      %v234 = vunpack.c.l.b16 %v150
      %v235 = vunpack.c.h.b16 %v150
      %v236 = vunpack.c.l.b16 %v151
      %v237 = vunpack.c.h.b16 %v151
      %v238 = vunpack.c.l.b16 %v152
      %v239 = vunpack.c.h.b16 %v152
      %v240 = vunpack.c.l.b16 %v153
      %v241 = vunpack.c.h.b16 %v153
      %v242 = vunpack.c.l.b16 %v154
      %v243 = vunpack.c.h.b16 %v154
      %v244 = vunpack.c.l.b16 %v155
      %v245 = vunpack.c.h.b16 %v155
      %v246 = vunpack.c.l.b16 %v156
      %v247 = vunpack.c.h.b16 %v156
      %v248 = vunpack.c.l.b16 %v157
      %v249 = vunpack.c.h.b16 %v157
      %v250 = vunpack.c.l.b16 %v158
      %v251 = vunpack.c.h.b16 %v158
      %v252 = vunpack.c.l.b16 %v159
      %v253 = vunpack.c.h.b16 %v159
      %v254 = vunpack.c.l.b16 %v160
      %v255 = vunpack.c.h.b16 %v160
      %v256 = vunpack.c.l.b16 %v161
      %v257 = vunpack.c.h.b16 %v161
      %v258 = vunpack.c.l.b16 %v162
      %v259 = vunpack.c.h.b16 %v162
      %v260 = vunpack.c.l.b16 %v163
      %v261 = vunpack.c.h.b16 %v163
      %v262 = vunpack.c.l.b16 %v164
      %v263 = vunpack.c.h.b16 %v164
      %v264 = vunpack.c.l.b16 %v165
      %v265 = vunpack.c.h.b16 %v165
      %v266 = vunpack.c.l.b16 %v166
      %v267 = vunpack.c.h.b16 %v166
      %v268 = vunpack.c.l.b16 %v167
      %v269 = vunpack.c.h.b16 %v167
      %v270 = vunpack.c.l.b16 %v168
      %v271 = vunpack.c.h.b16 %v168
      %v272 = vunpack.c.l.b16 %v169
      %v273 = vunpack.c.h.b16 %v169
      %v274 = vunpack.c.l.b16 %v170
      %v275 = vunpack.c.h.b16 %v170
      %v276 = vunpack.c.l.b16 %v171
      %v277 = vunpack.c.h.b16 %v171
      %v278 = vunpack.c.l.b16 %v172
      %v279 = vunpack.c.h.b16 %v172
      %v280 = vunpack.c.l.b16 %v173
      %v281 = vunpack.c.h.b16 %v173
      %v282 = vunpack.c.l.b16 %v174
      %v283 = vunpack.c.h.b16 %v174
      %v284 = vunpack.c.l.b16 %v175
      %v285 = vunpack.c.h.b16 %v175
      %v286 = vunpack.c.l.b16 %v176
      %v287 = vunpack.c.h.b16 %v176
      %v288 = vunpack.c.l.b16 %v177
      %v289 = vunpack.c.h.b16 %v177
      %v290 = vunpack.c.l.b16 %v178
      %v291 = vunpack.c.h.b16 %v178
      %v292 = vunpack.c.l.b16 %v179
      %v293 = vunpack.c.h.b16 %v179
      %v294 = vpack.c.b16 %v232, %v230
      %v295 = vpack.c.b16 %v233, %v231
      %v296 = vpack.c.b16 %v236, %v234
      %v297 = vpack.c.b16 %v237, %v235
      %v298 = vpack.c.b16 %v240, %v238
      %v299 = vpack.c.b16 %v241, %v239
      %v300 = vpack.c.b16 %v244, %v242
      %v301 = vpack.c.b16 %v245, %v243
      %v302 = vpack.c.b16 %v248, %v246
      %v303 = vpack.c.b16 %v249, %v247
      %v304 = vpack.c.b16 %v252, %v250
      %v305 = vpack.c.b16 %v253, %v251
      %v306 = vpack.c.b16 %v256, %v254
      %v307 = vpack.c.b16 %v257, %v255
      %v308 = vpack.c.b16 %v260, %v258
      %v309 = vpack.c.b16 %v261, %v259
      %v310 = vpack.c.b16 %v264, %v262
      %v311 = vpack.c.b16 %v265, %v263
      %v312 = vpack.c.b16 %v268, %v266
      %v313 = vpack.c.b16 %v269, %v267
      %v314 = vpack.c.b16 %v272, %v270
      %v315 = vpack.c.b16 %v273, %v271
      %v316 = vpack.c.b16 %v276, %v274
      %v317 = vpack.c.b16 %v277, %v275
      %v318 = vpack.c.b16 %v280, %v278
      %v319 = vpack.c.b16 %v281, %v279
      %v320 = vpack.c.b16 %v284, %v282
      %v321 = vpack.c.b16 %v285, %v283
      %v322 = vpack.c.b16 %v288, %v286
      %v323 = vpack.c.b16 %v289, %v287
      %v324 = vpack.c.b16 %v292, %v290
      %v325 = vpack.c.b16 %v293, %v291
      %v360 = vunpack.c.l.b16 %v180
      %v361 = vunpack.c.l.b16 %v181
      %v362 = vunpack.c.l.b16 %v182
      %v363 = vunpack.c.l.b16 %v183
      %v364 = vunpack.c.l.b16 %v184
      %v365 = vunpack.c.l.b16 %v185
      %v366 = vunpack.c.l.b16 %v186
      %v367 = vunpack.c.l.b16 %v187
      %v368 = vunpack.c.l.b16 %v188
      %v369 = vunpack.c.l.b16 %v189
      %v370 = vunpack.c.l.b16 %v190
      %v371 = vunpack.c.l.b16 %v191
      %v372 = vunpack.c.l.b16 %v192
      %v373 = vunpack.c.l.b16 %v193
      %v374 = vunpack.c.l.b16 %v194
      %v375 = vunpack.c.l.b16 %v195
      %v376 = vunpack.c.l.b16 %v196
      %v377 = vunpack.c.l.b16 %v197
      %v378 = vpack.c.b16 %v361, %v360
      %v379 = vpack.c.b16 %v363, %v362
      %v380 = vpack.c.b16 %v365, %v364
      %v381 = vpack.c.b16 %v367, %v366
      %v382 = vpack.c.b16 %v369, %v368
      %v383 = vpack.c.b16 %v371, %v370
      %v384 = vpack.c.b16 %v373, %v372
      %v385 = vpack.c.b16 %v375, %v374
      %v386 = vpack.c.b16 %v377, %v376
      %vm396 = vcmask 130048
      %v398 = vsel %vm396, %v295, 0
      %v401 = vsel %vm396, %v297, 0
      %v404 = vsel %vm396, %v299, 0
      %v407 = vsel %vm396, %v301, 0
      %v410 = vsel %vm396, %v303, 0
      %v413 = vsel %vm396, %v305, 0
      %v416 = vsel %vm396, %v307, 0
      %v419 = vsel %vm396, %v309, 0
      %v422 = vsel %vm396, %v311, 0
      %v425 = vsel %vm396, %v313, 0
      %v428 = vsel %vm396, %v315, 0
      %v431 = vsel %vm396, %v317, 0
      %v434 = vsel %vm396, %v319, 0
      %v437 = vsel %vm396, %v321, 0
      %v440 = vsel %vm396, %v323, 0
      %v443 = vsel %vm396, %v325, 0
      %445 = vmatprep.subr.bf16.mxu0 0
      %446 = vmatpush1.bf16.msra.mxu0 %v385
      %447 = vmatprep.subr.bf16.mxu0 0
      %448 = vmatpush1.bf16.msra.mxu0 %v384
      %449 = vmatprep.subr.bf16.mxu0 0
      %450 = vmatpush1.bf16.msra.mxu0 %v383
      %451 = vmatprep.subr.bf16.mxu0 0
      %452 = vmatpush1.bf16.msra.mxu0 %v382
      %453 = vmatprep.subr.bf16.mxu0 0
      %454 = vmatpush1.bf16.msra.mxu0 %v381
      %455 = vmatprep.subr.bf16.mxu0 0
      %456 = vmatpush1.bf16.msra.mxu0 %v380
      %457 = vmatprep.subr.bf16.mxu0 0
      %458 = vmatpush1.bf16.msra.mxu0 %v379
      %459 = vmatprep.subr.bf16.mxu0 0
      %460 = vmatpush1.bf16.msra.mxu0 %v378
      %461 = vmatprep.subr.bf16.mxu0 0
      %462 = vmatpush2.bf16.msra.mxu0 0
      %463 = vmatprep.subr.bf16.mxu0 0
      %464 = vmatpush2.bf16.msra.mxu0 0
      %465 = vmatprep.subr.bf16.mxu0 0
      %466 = vmatpush2.bf16.msra.mxu0 0
      %467 = vmatprep.subr.bf16.mxu0 0
      %468 = vmatpush2.bf16.msra.mxu0 0
      %469 = vmatprep.subr.bf16.mxu0 0
      %470 = vmatpush2.bf16.msra.mxu0 0
      %471 = vmatprep.subr.bf16.mxu0 0
      %472 = vmatpush2.bf16.msra.mxu0 0
      %473 = vmatprep.subr.bf16.mxu0 0
      %474 = vmatpush2.bf16.msra.mxu0 0
      %475 = vmatprep.subr.bf16.mxu0 0
      %476 = vmatpush2.bf16.msra.mxu0 %v386
      %477 = vmatprep.mubr.bf16.mxu0 %v398
      %478 = vmatmul.mubr.bf16.gmra.mxu0 %v294
      %v479 = vpop.f32.mrf.mxu0
      %v480 = vadd.f32 0.0, %v479
      %v481 = vpop.f32.mrf.mxu0
      %v482 = vpop.f32.mrf.mxu0
      %v483 = vadd.f32 0.0, %v482
      %v484 = vpop.f32.mrf.mxu0
      %485 = vmatprep.mubr.bf16.mxu0 %v401
      %486 = vmatmul.mubr.bf16.gmra.mxu0 %v296
      %v487 = vpop.f32.mrf.mxu0
      %v488 = vadd.f32 0.0, %v487
      %v489 = vpop.f32.mrf.mxu0
      %v490 = vpop.f32.mrf.mxu0
      %v491 = vadd.f32 0.0, %v490
      %v492 = vpop.f32.mrf.mxu0
      %493 = vmatprep.mubr.bf16.mxu0 %v404
      %494 = vmatmul.mubr.bf16.gmra.mxu0 %v298
      %v495 = vpop.f32.mrf.mxu0
      %v496 = vadd.f32 0.0, %v495
      %v497 = vpop.f32.mrf.mxu0
      %v498 = vpop.f32.mrf.mxu0
      %v499 = vadd.f32 0.0, %v498
      %v500 = vpop.f32.mrf.mxu0
      %501 = vmatprep.mubr.bf16.mxu0 %v407
      %502 = vmatmul.mubr.bf16.gmra.mxu0 %v300
      %v503 = vpop.f32.mrf.mxu0
      %v504 = vadd.f32 0.0, %v503
      %v505 = vpop.f32.mrf.mxu0
      %v506 = vpop.f32.mrf.mxu0
      %v507 = vadd.f32 0.0, %v506
      %v508 = vpop.f32.mrf.mxu0
      %509 = vmatprep.mubr.bf16.mxu0 %v410
      %510 = vmatmul.mubr.bf16.gmra.mxu0 %v302
      %v511 = vpop.f32.mrf.mxu0
      %v512 = vadd.f32 0.0, %v511
      %v513 = vpop.f32.mrf.mxu0
      %v514 = vpop.f32.mrf.mxu0
      %v515 = vadd.f32 0.0, %v514
      %v516 = vpop.f32.mrf.mxu0
      %517 = vmatprep.mubr.bf16.mxu0 %v413
      %518 = vmatmul.mubr.bf16.gmra.mxu0 %v304
      %v519 = vpop.f32.mrf.mxu0
      %v520 = vadd.f32 0.0, %v519
      %v521 = vpop.f32.mrf.mxu0
      %v522 = vpop.f32.mrf.mxu0
      %v523 = vadd.f32 0.0, %v522
      %v524 = vpop.f32.mrf.mxu0
      %525 = vmatprep.mubr.bf16.mxu0 %v416
      %526 = vmatmul.mubr.bf16.gmra.mxu0 %v306
      %v527 = vpop.f32.mrf.mxu0
      %v528 = vadd.f32 0.0, %v527
      %v529 = vpop.f32.mrf.mxu0
      %v530 = vpop.f32.mrf.mxu0
      %v531 = vadd.f32 0.0, %v530
      %v532 = vpop.f32.mrf.mxu0
      %533 = vmatprep.mubr.bf16.mxu0 %v419
      %534 = vmatmul.mubr.bf16.gmra.mxu0 %v308
      %v535 = vpop.f32.mrf.mxu0
      %v536 = vadd.f32 0.0, %v535
      %v537 = vpop.f32.mrf.mxu0
      %v538 = vpop.f32.mrf.mxu0
      %v539 = vadd.f32 0.0, %v538
      %v540 = vpop.f32.mrf.mxu0
      %541 = vmatprep.mubr.bf16.mxu0 %v422
      %542 = vmatmul.mubr.bf16.gmra.mxu0 %v310
      %v543 = vpop.f32.mrf.mxu0
      %v544 = vadd.f32 0.0, %v543
      %v545 = vpop.f32.mrf.mxu0
      %v546 = vpop.f32.mrf.mxu0
      %v547 = vadd.f32 0.0, %v546
      %v548 = vpop.f32.mrf.mxu0
      %549 = vmatprep.mubr.bf16.mxu0 %v425
      %550 = vmatmul.mubr.bf16.gmra.mxu0 %v312
      %v551 = vpop.f32.mrf.mxu0
      %v552 = vadd.f32 0.0, %v551
      %v553 = vpop.f32.mrf.mxu0
      %v554 = vpop.f32.mrf.mxu0
      %v555 = vadd.f32 0.0, %v554
      %v556 = vpop.f32.mrf.mxu0
      %557 = vmatprep.mubr.bf16.mxu0 %v428
      %558 = vmatmul.mubr.bf16.gmra.mxu0 %v314
      %v559 = vpop.f32.mrf.mxu0
      %v560 = vadd.f32 0.0, %v559
      %v561 = vpop.f32.mrf.mxu0
      %v562 = vpop.f32.mrf.mxu0
      %v563 = vadd.f32 0.0, %v562
      %v564 = vpop.f32.mrf.mxu0
      %565 = vmatprep.mubr.bf16.mxu0 %v431
      %566 = vmatmul.mubr.bf16.gmra.mxu0 %v316
      %v567 = vpop.f32.mrf.mxu0
      %v568 = vadd.f32 0.0, %v567
      %v569 = vpop.f32.mrf.mxu0
      %v570 = vpop.f32.mrf.mxu0
      %v571 = vadd.f32 0.0, %v570
      %v572 = vpop.f32.mrf.mxu0
      %573 = vmatprep.mubr.bf16.mxu0 %v434
      %574 = vmatmul.mubr.bf16.gmra.mxu0 %v318
      %v575 = vpop.f32.mrf.mxu0
      %v576 = vadd.f32 0.0, %v575
      %v577 = vpop.f32.mrf.mxu0
      %v578 = vpop.f32.mrf.mxu0
      %v579 = vadd.f32 0.0, %v578
      %v580 = vpop.f32.mrf.mxu0
      %581 = vmatprep.mubr.bf16.mxu0 %v437
      %582 = vmatmul.mubr.bf16.gmra.mxu0 %v320
      %v583 = vpop.f32.mrf.mxu0
      %v584 = vadd.f32 0.0, %v583
      %v585 = vpop.f32.mrf.mxu0
      %v586 = vpop.f32.mrf.mxu0
      %v587 = vadd.f32 0.0, %v586
      %v588 = vpop.f32.mrf.mxu0
      %589 = vmatprep.mubr.bf16.mxu0 %v440
      %590 = vmatmul.mubr.bf16.gmra.mxu0 %v322
      %v591 = vpop.f32.mrf.mxu0
      %v592 = vadd.f32 0.0, %v591
      %v593 = vpop.f32.mrf.mxu0
      %v594 = vpop.f32.mrf.mxu0
      %v595 = vadd.f32 0.0, %v594
      %v596 = vpop.f32.mrf.mxu0
      %597 = vmatprep.mubr.bf16.mxu0 %v443
      %598 = vmatmul.mubr.bf16.gmra.mxu0 %v324
      %v599 = vpop.f32.mrf.mxu0
      %v600 = vadd.f32 0.0, %v599
      %v601 = vpop.f32.mrf.mxu0
      %v602 = vpop.f32.mrf.mxu0
      %v603 = vadd.f32 0.0, %v602
      %v604 = vpop.f32.mrf.mxu0
      %605 = vdwg.mxu0
      %v606 = vadd.f32 %v480, %v483
      %v607 = vadd.f32 %v606, %v488
      %v608 = vadd.f32 %v607, %v491
      %v609 = vadd.f32 %v608, %v496
      %v610 = vadd.f32 %v609, %v499
      %v611 = vadd.f32 %v610, %v504
      %v612 = vadd.f32 %v611, %v507
      %v613 = vadd.f32 %v612, %v512
      %v614 = vadd.f32 %v613, %v515
      %v615 = vadd.f32 %v614, %v520
      %v616 = vadd.f32 %v615, %v523
      %v617 = vadd.f32 %v616, %v528
      %v618 = vadd.f32 %v617, %v531
      %v619 = vadd.f32 %v618, %v536
      %v620 = vadd.f32 %v619, %v539
      %v621 = vadd.f32 %v620, %v544
      %v622 = vadd.f32 %v621, %v547
      %v623 = vadd.f32 %v622, %v552
      %v624 = vadd.f32 %v623, %v555
      %v625 = vadd.f32 %v624, %v560
      %v626 = vadd.f32 %v625, %v563
      %v627 = vadd.f32 %v626, %v568
      %v628 = vadd.f32 %v627, %v571
      %v629 = vadd.f32 %v628, %v576
      %v630 = vadd.f32 %v629, %v579
      %v631 = vadd.f32 %v630, %v584
      %v632 = vadd.f32 %v631, %v587
      %v633 = vadd.f32 %v632, %v592
      %v634 = vadd.f32 %v633, %v595
      %v635 = vadd.f32 %v634, %v600
      %v636 = vadd.f32 %v635, %v603
      %v637 = vrot.slane %v636, 4
      %v638 = vadd.f32 %v636, %v637
      %v639 = vrot.slane %v638, 2
      %v640 = vadd.f32 %v638, %v639
      %v641 = vrot.slane %v640, 1
      %v642 = vadd.f32 %v640, %v641
      %v643 = vmul.f32 %v480, %v480
      %v644 = vmul.f32 %v483, %v483
      %v645 = vmul.f32 %v488, %v488
      %v646 = vmul.f32 %v491, %v491
      %v647 = vmul.f32 %v496, %v496
      %v648 = vmul.f32 %v499, %v499
      %v649 = vmul.f32 %v504, %v504
      %v650 = vmul.f32 %v507, %v507
      %v651 = vmul.f32 %v512, %v512
      %v652 = vmul.f32 %v515, %v515
      %v653 = vmul.f32 %v520, %v520
      %v654 = vmul.f32 %v523, %v523
      %v655 = vmul.f32 %v528, %v528
      %v656 = vmul.f32 %v531, %v531
      %v657 = vmul.f32 %v536, %v536
      %v658 = vmul.f32 %v539, %v539
      %v659 = vmul.f32 %v544, %v544
      %v660 = vmul.f32 %v547, %v547
      %v661 = vmul.f32 %v552, %v552
      %v662 = vmul.f32 %v555, %v555
      %v663 = vmul.f32 %v560, %v560
      %v664 = vmul.f32 %v563, %v563
      %v665 = vmul.f32 %v568, %v568
      %v666 = vmul.f32 %v571, %v571
      %v667 = vmul.f32 %v576, %v576
      %v668 = vmul.f32 %v579, %v579
      %v669 = vmul.f32 %v584, %v584
      %v670 = vmul.f32 %v587, %v587
      %v671 = vmul.f32 %v592, %v592
      %v672 = vmul.f32 %v595, %v595
      %v673 = vmul.f32 %v600, %v600
      %v674 = vmul.f32 %v603, %v603
      %v675 = vadd.f32 %v643, %v644
      %v676 = vadd.f32 %v675, %v645
      %v677 = vadd.f32 %v676, %v646
      %v678 = vadd.f32 %v677, %v647
      %v679 = vadd.f32 %v678, %v648
      %v680 = vadd.f32 %v679, %v649
      %v681 = vadd.f32 %v680, %v650
      %v682 = vadd.f32 %v681, %v651
      %v683 = vadd.f32 %v682, %v652
      %v684 = vadd.f32 %v683, %v653
      %v685 = vadd.f32 %v684, %v654
      %v686 = vadd.f32 %v685, %v655
      %v687 = vadd.f32 %v686, %v656
      %v688 = vadd.f32 %v687, %v657
      %v689 = vadd.f32 %v688, %v658
      %v690 = vadd.f32 %v689, %v659
      %v691 = vadd.f32 %v690, %v660
      %v692 = vadd.f32 %v691, %v661
      %v693 = vadd.f32 %v692, %v662
      %v694 = vadd.f32 %v693, %v663
      %v695 = vadd.f32 %v694, %v664
      %v696 = vadd.f32 %v695, %v665
      %v697 = vadd.f32 %v696, %v666
      %v698 = vadd.f32 %v697, %v667
      %v699 = vadd.f32 %v698, %v668
      %v700 = vadd.f32 %v699, %v669
      %v701 = vadd.f32 %v700, %v670
      %v702 = vadd.f32 %v701, %v671
      %v703 = vadd.f32 %v702, %v672
      %v704 = vadd.f32 %v703, %v673
      %v705 = vadd.f32 %v704, %v674
      %v706 = vrot.slane %v705, 4
      %v707 = vadd.f32 %v705, %v706
      %v708 = vrot.slane %v707, 2
      %v709 = vadd.f32 %v707, %v708
      %v710 = vrot.slane %v709, 1
      %v711 = vadd.f32 %v709, %v710
      %v712 = vlaneseq
      %v713 = vshrl.u32 %v712, 7
      %vm714 = vcmp.eq.s32.totalorder %v713, 0
      %vm715 = vcmp.eq.s32.totalorder %v713, 1
      %v716 = vsel %vm715, %v711, 0.0
      %v717 = vsel %vm714, %v642, %v716
      %718 = vst [vmem:[%s146] sm:$0xff] %v717
      %p719 = scmp.lt.s32.totalorder %s13, 1
      %s720 = scalar_select %p719, %s13, 1
      %s721 = smul.addr %s720, 8
      %s722 = scalar_lea.vmem %s2, %s721
      // Predicated region
      $region29: #{_lambda_.4} parent=27 // pred_check
        %p723 = pneg %p78
      $region30: #{_lambda_.4} parent=27 // pred_check_branch
        %725 = sbr.rel (%p723) target = $region32
      $region31: #{_lambda_.4} parent=27 // pred_region
        _
      $region32: #{_lambda_.4} parent=27 // pred_fallthru
        _
    $region28: #{_lambda_.4} parent=5 // pred_fallthru
      _
    %p726 = scmp.le.s32.totalorder 2, %s8
    // Predicated region
    $region33: #{_lambda_.4} parent=5 // pred_check
      %p727 = pneg %p726
    $region34: #{_lambda_.4} parent=5 // pred_check_branch
      %729 = sbr.rel (%p727) target = $region36
    $region35: #{_lambda_.4} parent=5 // pred_region
      %s730 = ssub.s32 %s8, 2
      // Predicated region
      $region37: #{_lambda_.4} parent=35 // pred_check
        %p731 = pneg %p84
      $region38: #{_lambda_.4} parent=35 // pred_check_branch
        %733 = sbr.rel (%p731) target = $region40
      $region39: #{_lambda_.4} parent=35 // pred_region
        %p734 = scmp.lt.s32.totalorder %s14, 1
        %s735 = scalar_select %p734, %s14, 1
        %s736 = smul.addr %s735, 8
        %s737 = scalar_lea.vmem %s2, %s736
      $region40: #{_lambda_.4} parent=35 // pred_fallthru
        _
    $region36: #{_lambda_.4} parent=5 // pred_fallthru
      _
  $region6: #{_lambda_.4} parent=0 // loop_footer
    %s12 = sadd.s32 1, %s8
  $region7: #{_lambda_.4} parent=0 // loop_footer_branch
    %7 = sbr.rel target = $region3
  $region8: #{_lambda_.4} parent=0 // loop_exit
    _

// kernel: _lambda_.5
$region0: #{_lambda_.5}
  #allocation0 [shape = 'u32[]', space=smem, size = 0x4, offset = 0x4, fixed_abs, tag = 'smem constant byte address 0x4 - core index']
  #allocation1 [shape = 'u32[144,128]{1,0:T(1,128)}', space=vmem, size = 0x12000, scoped, tag = 'internal scratch']
  %s0 = inlined_call_operand.vmem [shape: bf16[512,144], index: 0, kind: input, shape index: {}]
  %s1 = inlined_call_operand.vmem [shape: bf16[144,128], index: 1, kind: input, shape index: {}]
  %s2 = inlined_call_operand.vmem [shape: f32[1,128], index: 2, kind: input, shape index: {}]
  %s3 = inlined_call_operand.vmem [shape: f32[1,128], index: 3, kind: input, shape index: {}]
  %s4 = inlined_call_operand.vmem [shape: f32[128,128], index: 4, kind: output, shape index: {}]
  %s5 = sld [smem:[#allocation0]]
  $region49: #{_lambda_.5} parent=0
    _
  %s7 = ssub.s32 1, %s5
  %s8 = scalar_select 0, %s7, %s5
  loop: start=0, step=1, limit=4
  $region2: #{_lambda_.5} parent=0 // loop_pre_header
    _
  $region3: #{_lambda_.5} parent=0 // loop_header
    %s10 = sphi 0, %s14
    %p11 = scmp.ge.s32.totalorder %s10, 4
    %s20 = sphi 0, %s22
    %s23 = sphi 0, %s20
    %s24 = sphi 0, %s23
    %s40 = sphi 0, %s24
    %s44 = sphi 0, %s44
    %s46 = sphi 0, %s44
    %s47 = sphi 0, %s46
    %s61 = sphi 0, %s47
    %s65 = sphi 0, %s65
    %s67 = sphi 0, %s65
    %s68 = sphi 0, %s67
    %s82 = sphi 0, %s68
    %s86 = sphi 0, %s86
    %s88 = sphi 0, %s86
    %s89 = sphi 0, %s88
    %s103 = sphi 0, %s89
    %s109 = sphi 0, %s111
    %s112 = sphi 0, %s109
    %s113 = sphi 0, %s112
    %s129 = sphi 0, %s113
  $region4: #{_lambda_.5} parent=0 // loop_header_branch
    %13 = sbr.rel (%p11) target = $region8
  $region5: #{_lambda_.5} parent=0 // loop_body
    %s15 = ssub.s32 %s10, 1
    %s16 = ssub.s32 %s10, 2
    %s17 = sadd.s32 %s10, 1
    %s18 = ssub.s32 %s10, %s17
    %p19 = scmp.eq.s32.totalorder %s18, 0
    %s21 = sadd.s32 %s20, 1
    %s22 = scalar_select %p19, %s20, %s21
    %p25 = pneg %p19
    %p26 = scmp.eq.s32.totalorder %s10, 1
    %p27 = por %p25, %p26
    %p28 = scmp.ne.s32.totalorder %s20, %s23
    %p29 = scmp.eq.s32.totalorder %s10, 0
    %p30 = por %p28, %p29
    %p31 = scmp.ne.s32.totalorder %s20, %s23
    %p32 = scmp.eq.s32.totalorder %s15, 1
    %p33 = por %p31, %p32
    %p34 = scmp.ne.s32.totalorder %s23, %s24
    %p35 = scmp.eq.s32.totalorder %s15, 0
    %p36 = por %p34, %p35
    %p37 = scmp.ne.s32.totalorder %s23, %s24
    %p38 = scmp.eq.s32.totalorder %s16, 1
    %p39 = por %p37, %p38
    %p41 = scmp.ne.s32.totalorder %s24, %s40
    %p42 = scmp.eq.s32.totalorder %s16, 0
    %p43 = por %p41, %p42
    %s45 = sadd.s32 %s44, 1
    %p48 = scmp.eq.s32.totalorder %s10, 1
    %p49 = scmp.ne.s32.totalorder %s44, %s46
    %p50 = scmp.eq.s32.totalorder %s10, 0
    %p51 = por %p49, %p50
    %p52 = scmp.ne.s32.totalorder %s44, %s46
    %p53 = scmp.eq.s32.totalorder %s15, 1
    %p54 = por %p52, %p53
    %p55 = scmp.ne.s32.totalorder %s46, %s47
    %p56 = scmp.eq.s32.totalorder %s15, 0
    %p57 = por %p55, %p56
    %p58 = scmp.ne.s32.totalorder %s46, %s47
    %p59 = scmp.eq.s32.totalorder %s16, 1
    %p60 = por %p58, %p59
    %p62 = scmp.ne.s32.totalorder %s47, %s61
    %p63 = scmp.eq.s32.totalorder %s16, 0
    %p64 = por %p62, %p63
    %s66 = sadd.s32 %s65, 1
    %p69 = scmp.eq.s32.totalorder %s10, 1
    %p70 = scmp.ne.s32.totalorder %s65, %s67
    %p71 = scmp.eq.s32.totalorder %s10, 0
    %p72 = por %p70, %p71
    %p73 = scmp.ne.s32.totalorder %s65, %s67
    %p74 = scmp.eq.s32.totalorder %s15, 1
    %p75 = por %p73, %p74
    %p76 = scmp.ne.s32.totalorder %s67, %s68
    %p77 = scmp.eq.s32.totalorder %s15, 0
    %p78 = por %p76, %p77
    %p79 = scmp.ne.s32.totalorder %s67, %s68
    %p80 = scmp.eq.s32.totalorder %s16, 1
    %p81 = por %p79, %p80
    %p83 = scmp.ne.s32.totalorder %s68, %s82
    %p84 = scmp.eq.s32.totalorder %s16, 0
    %p85 = por %p83, %p84
    %s87 = sadd.s32 %s86, 1
    %p90 = scmp.eq.s32.totalorder %s10, 1
    %p91 = scmp.ne.s32.totalorder %s86, %s88
    %p92 = scmp.eq.s32.totalorder %s10, 0
    %p93 = por %p91, %p92
    %p94 = scmp.ne.s32.totalorder %s86, %s88
    %p95 = scmp.eq.s32.totalorder %s15, 1
    %p96 = por %p94, %p95
    %p97 = scmp.ne.s32.totalorder %s88, %s89
    %p98 = scmp.eq.s32.totalorder %s15, 0
    %p99 = por %p97, %p98
    %p100 = scmp.ne.s32.totalorder %s88, %s89
    %p101 = scmp.eq.s32.totalorder %s16, 1
    %p102 = por %p100, %p101
    %p104 = scmp.ne.s32.totalorder %s89, %s103
    %p105 = scmp.eq.s32.totalorder %s16, 0
    %p106 = por %p104, %p105
    %s107 = ssub.s32 %s10, %s17
    %p108 = scmp.eq.s32.totalorder %s107, 0
    %s110 = sadd.s32 %s109, 1
    %s111 = scalar_select %p108, %s109, %s110
    %p114 = pneg %p108
    %p115 = scmp.eq.s32.totalorder %s10, 1
    %p116 = por %p114, %p115
    %p117 = scmp.ne.s32.totalorder %s109, %s112
    %p118 = scmp.eq.s32.totalorder %s10, 0
    %p119 = por %p117, %p118
    %p120 = scmp.ne.s32.totalorder %s109, %s112
    %p121 = scmp.eq.s32.totalorder %s15, 1
    %p122 = por %p120, %p121
    %p123 = scmp.ne.s32.totalorder %s112, %s113
    %p124 = scmp.eq.s32.totalorder %s15, 0
    %p125 = por %p123, %p124
    %p126 = scmp.ne.s32.totalorder %s112, %s113
    %p127 = scmp.eq.s32.totalorder %s16, 1
    %p128 = por %p126, %p127
    %p130 = scmp.ne.s32.totalorder %s113, %s129
    %p131 = scmp.eq.s32.totalorder %s16, 0
    %p132 = por %p130, %p131
    %p133 = scmp.le.s32.totalorder 1, %s10
    %p134 = scmp.lt.s32.totalorder %s10, 3
    %p135 = pnand %p133, %p134
    %p136 = pneg %p135
    // Predicated region
    $region9: #{_lambda_.5} parent=5 // pred_check
      _
    $region10: #{_lambda_.5} parent=5 // pred_check_branch
      %138 = sbr.rel (%p135) target = $region12
    $region11: #{_lambda_.5} parent=5 // pred_region
      %s139 = ssub.s32 %s10, 1
      // Predicated region
      $region13: #{_lambda_.5} parent=11 // pred_check
        %p140 = pneg %p57
      $region14: #{_lambda_.5} parent=11 // pred_check_branch
        %142 = sbr.rel (%p140) target = $region16
      $region15: #{_lambda_.5} parent=11 // pred_region
        _
      $region16: #{_lambda_.5} parent=11 // pred_fallthru
        _
      // Predicated region
      $region17: #{_lambda_.5} parent=11 // pred_check
        %p143 = pneg %p78
      $region18: #{_lambda_.5} parent=11 // pred_check_branch
        %145 = sbr.rel (%p143) target = $region20
      $region19: #{_lambda_.5} parent=11 // pred_region
        _
      $region20: #{_lambda_.5} parent=11 // pred_fallthru
        _
      // Predicated region
      $region21: #{_lambda_.5} parent=11 // pred_check
        %p146 = pneg %p99
      $region22: #{_lambda_.5} parent=11 // pred_check_branch
        %148 = sbr.rel (%p146) target = $region24
      $region23: #{_lambda_.5} parent=11 // pred_region
        _
      $region24: #{_lambda_.5} parent=11 // pred_fallthru
        _
    $region12: #{_lambda_.5} parent=5 // pred_fallthru
      _
    %p149 = scmp.lt.s32.totalorder %s10, 2
    // Predicated region
    $region25: #{_lambda_.5} parent=5 // pred_check
      %p150 = pneg %p149
    $region26: #{_lambda_.5} parent=5 // pred_check_branch
      %152 = sbr.rel (%p150) target = $region28
    $region27: #{_lambda_.5} parent=5 // pred_region
      // Predicated region
      $region29: #{_lambda_.5} parent=27 // pred_check
        %p153 = pneg %p30
      $region30: #{_lambda_.5} parent=27 // pred_check_branch
        %155 = sbr.rel (%p153) target = $region32
      $region31: #{_lambda_.5} parent=27 // pred_region
        %s156 = smul.u32 32, %s10
        %p157 = scmp.lt.s32.totalorder %s156, 63
        %s158 = scalar_select %p157, %s156, 63
        %s159 = smul.addr %s158, 2
        %s160 = smul.addr %s159, 4
        %s161 = scalar_lea.vmem %s0, %s160
        %s162 = smul.u32 32, %s10
      $region32: #{_lambda_.5} parent=27 // pred_fallthru
        _
    $region28: #{_lambda_.5} parent=5 // pred_fallthru
      _
    %p163 = scmp.le.s32.totalorder 1, %s10
    %p164 = scmp.lt.s32.totalorder %s10, 3
    %p165 = pnand %p163, %p164
    %p166 = pneg %p165
    // Predicated region
    $region33: #{_lambda_.5} parent=5 // pred_check
      _
    $region34: #{_lambda_.5} parent=5 // pred_check_branch
      %168 = sbr.rel (%p165) target = $region36
    $region35: #{_lambda_.5} parent=5 // pred_region
      %s169 = ssub.s32 %s10, 1
      %s170 = smul.u32 32, %s15
      %p171 = scmp.lt.s32.totalorder %s170, 63
      %s172 = scalar_select %p171, %s170, 63
      %s173 = smul.addr %s172, 2
      %s174 = smul.addr %s173, 4
      %s175 = scalar_lea.vmem %s0, %s174
      %p176 = pneg %p36
      %p177 = pneg %p33
      %p178 = pneg %p57
      %p179 = pneg %p54
      %p180 = pneg %p78
      %p181 = pneg %p75
      %p182 = pneg %p99
      %p183 = pneg %p96
      %p184 = pneg %p125
      %p185 = pneg %p122
      %s186 = smul.u32 8, %s15
      %p187 = scmp.lt.s32.totalorder %s186, 15
      %s188 = scalar_select %p187, %s186, 15
      %s189 = smul.addr %s188, 8
      %s190 = scalar_lea.vmem %s4, %s189
      %s191 = smul.u32 32, %s15
      %p192 = scmp.lt.s32.totalorder %s191, 63
      %s193 = scalar_select %p192, %s191, 63
      %s194 = smul.addr %s193, 2
      %s195 = smul.addr %s194, 4
      %s196 = scalar_lea.vmem %s0, %s195
      %s197 = smul.u32 32, %s15
      %s198 = smul.u32 8, %s15
      %p199 = scmp.lt.s32.totalorder %s198, 15
      %s200 = scalar_select %p199, %s198, 15
      %s201 = smul.addr %s200, 8
      %s202 = scalar_lea.vmem %s4, %s201
      %s203 = smul.u32 8, %s15
      %v205 = vld [vmem:[%s196] sm:$0xff]
      %v206 = vld [vmem:[%s196 + $0x8] sm:$0xff]
      %v207 = vld [vmem:[%s196 + $0x10] sm:$0xff]
      %v208 = vld [vmem:[%s196 + $0x18] sm:$0xff]
      %v209 = vld [vmem:[%s196 + $0x20] sm:$0xff]
      %v210 = vld [vmem:[%s196 + $0x28] sm:$0xff]
      %v211 = vld [vmem:[%s196 + $0x30] sm:$0xff]
      %v212 = vld [vmem:[%s196 + $0x38] sm:$0xff]
      %v213 = vld [vmem:[%s196 + $0x40] sm:$0xff]
      %v214 = vld [vmem:[%s196 + $0x48] sm:$0xff]
      %v215 = vld [vmem:[%s196 + $0x50] sm:$0xff]
      %v216 = vld [vmem:[%s196 + $0x58] sm:$0xff]
      %v217 = vld [vmem:[%s196 + $0x60] sm:$0xff]
      %v218 = vld [vmem:[%s196 + $0x68] sm:$0xff]
      %v219 = vld [vmem:[%s196 + $0x70] sm:$0xff]
      %v220 = vld [vmem:[%s196 + $0x78] sm:$0xff]
      %v221 = vld [vmem:[%s196 + $0x80] sm:$0xff]
      %v222 = vld [vmem:[%s196 + $0x88] sm:$0xff]
      %v223 = vld [vmem:[%s196 + $0x90] sm:$0xff]
      %v224 = vld [vmem:[%s196 + $0x98] sm:$0xff]
      %v225 = vld [vmem:[%s196 + $0xa0] sm:$0xff]
      %v226 = vld [vmem:[%s196 + $0xa8] sm:$0xff]
      %v227 = vld [vmem:[%s196 + $0xb0] sm:$0xff]
      %v228 = vld [vmem:[%s196 + $0xb8] sm:$0xff]
      %v229 = vld [vmem:[%s196 + $0xc0] sm:$0xff]
      %v230 = vld [vmem:[%s196 + $0xc8] sm:$0xff]
      %v231 = vld [vmem:[%s196 + $0xd0] sm:$0xff]
      %v232 = vld [vmem:[%s196 + $0xd8] sm:$0xff]
      %v233 = vld [vmem:[%s196 + $0xe0] sm:$0xff]
      %v234 = vld [vmem:[%s196 + $0xe8] sm:$0xff]
      %v235 = vld [vmem:[%s196 + $0xf0] sm:$0xff]
      %v236 = vld [vmem:[%s196 + $0xf8] sm:$0xff]
      %v237 = vld [vmem:[%s1] sm:$0xf]
      %v238 = vld [vmem:[%s1 + $0x4] sm:$0xf]
      %v239 = vld [vmem:[%s1 + $0x8] sm:$0xf]
      %v240 = vld [vmem:[%s1 + $0xc] sm:$0xf]
      %v241 = vld [vmem:[%s1 + $0x10] sm:$0xf]
      %v242 = vld [vmem:[%s1 + $0x14] sm:$0xf]
      %v243 = vld [vmem:[%s1 + $0x18] sm:$0xf]
      %v244 = vld [vmem:[%s1 + $0x1c] sm:$0xf]
      %v245 = vld [vmem:[%s1 + $0x20] sm:$0xf]
      %v246 = vld [vmem:[%s1 + $0x24] sm:$0xf]
      %v247 = vld [vmem:[%s1 + $0x28] sm:$0xf]
      %v248 = vld [vmem:[%s1 + $0x2c] sm:$0xf]
      %v249 = vld [vmem:[%s1 + $0x30] sm:$0xf]
      %v250 = vld [vmem:[%s1 + $0x34] sm:$0xf]
      %v251 = vld [vmem:[%s1 + $0x38] sm:$0xf]
      %v252 = vld [vmem:[%s1 + $0x3c] sm:$0xf]
      %v253 = vld [vmem:[%s1 + $0x40] sm:$0xf]
      %v254 = vld [vmem:[%s1 + $0x44] sm:$0xf]
      %v287 = vunpack.c.l.b16 %v205
      %v288 = vunpack.c.h.b16 %v205
      %v289 = vunpack.c.l.b16 %v206
      %v290 = vunpack.c.h.b16 %v206
      %v291 = vunpack.c.l.b16 %v207
      %v292 = vunpack.c.h.b16 %v207
      %v293 = vunpack.c.l.b16 %v208
      %v294 = vunpack.c.h.b16 %v208
      %v295 = vunpack.c.l.b16 %v209
      %v296 = vunpack.c.h.b16 %v209
      %v297 = vunpack.c.l.b16 %v210
      %v298 = vunpack.c.h.b16 %v210
      %v299 = vunpack.c.l.b16 %v211
      %v300 = vunpack.c.h.b16 %v211
      %v301 = vunpack.c.l.b16 %v212
      %v302 = vunpack.c.h.b16 %v212
      %v303 = vunpack.c.l.b16 %v213
      %v304 = vunpack.c.h.b16 %v213
      %v305 = vunpack.c.l.b16 %v214
      %v306 = vunpack.c.h.b16 %v214
      %v307 = vunpack.c.l.b16 %v215
      %v308 = vunpack.c.h.b16 %v215
      %v309 = vunpack.c.l.b16 %v216
      %v310 = vunpack.c.h.b16 %v216
      %v311 = vunpack.c.l.b16 %v217
      %v312 = vunpack.c.h.b16 %v217
      %v313 = vunpack.c.l.b16 %v218
      %v314 = vunpack.c.h.b16 %v218
      %v315 = vunpack.c.l.b16 %v219
      %v316 = vunpack.c.h.b16 %v219
      %v317 = vunpack.c.l.b16 %v220
      %v318 = vunpack.c.h.b16 %v220
      %v319 = vunpack.c.l.b16 %v221
      %v320 = vunpack.c.h.b16 %v221
      %v321 = vunpack.c.l.b16 %v222
      %v322 = vunpack.c.h.b16 %v222
      %v323 = vunpack.c.l.b16 %v223
      %v324 = vunpack.c.h.b16 %v223
      %v325 = vunpack.c.l.b16 %v224
      %v326 = vunpack.c.h.b16 %v224
      %v327 = vunpack.c.l.b16 %v225
      %v328 = vunpack.c.h.b16 %v225
      %v329 = vunpack.c.l.b16 %v226
      %v330 = vunpack.c.h.b16 %v226
      %v331 = vunpack.c.l.b16 %v227
      %v332 = vunpack.c.h.b16 %v227
      %v333 = vunpack.c.l.b16 %v228
      %v334 = vunpack.c.h.b16 %v228
      %v335 = vunpack.c.l.b16 %v229
      %v336 = vunpack.c.h.b16 %v229
      %v337 = vunpack.c.l.b16 %v230
      %v338 = vunpack.c.h.b16 %v230
      %v339 = vunpack.c.l.b16 %v231
      %v340 = vunpack.c.h.b16 %v231
      %v341 = vunpack.c.l.b16 %v232
      %v342 = vunpack.c.h.b16 %v232
      %v343 = vunpack.c.l.b16 %v233
      %v344 = vunpack.c.h.b16 %v233
      %v345 = vunpack.c.l.b16 %v234
      %v346 = vunpack.c.h.b16 %v234
      %v347 = vunpack.c.l.b16 %v235
      %v348 = vunpack.c.h.b16 %v235
      %v349 = vunpack.c.l.b16 %v236
      %v350 = vunpack.c.h.b16 %v236
      %v351 = vpack.c.b16 %v289, %v287
      %v352 = vpack.c.b16 %v290, %v288
      %v353 = vpack.c.b16 %v293, %v291
      %v354 = vpack.c.b16 %v294, %v292
      %v355 = vpack.c.b16 %v297, %v295
      %v356 = vpack.c.b16 %v298, %v296
      %v357 = vpack.c.b16 %v301, %v299
      %v358 = vpack.c.b16 %v302, %v300
      %v359 = vpack.c.b16 %v305, %v303
      %v360 = vpack.c.b16 %v306, %v304
      %v361 = vpack.c.b16 %v309, %v307
      %v362 = vpack.c.b16 %v310, %v308
      %v363 = vpack.c.b16 %v313, %v311
      %v364 = vpack.c.b16 %v314, %v312
      %v365 = vpack.c.b16 %v317, %v315
      %v366 = vpack.c.b16 %v318, %v316
      %v367 = vpack.c.b16 %v321, %v319
      %v368 = vpack.c.b16 %v322, %v320
      %v369 = vpack.c.b16 %v325, %v323
      %v370 = vpack.c.b16 %v326, %v324
      %v371 = vpack.c.b16 %v329, %v327
      %v372 = vpack.c.b16 %v330, %v328
      %v373 = vpack.c.b16 %v333, %v331
      %v374 = vpack.c.b16 %v334, %v332
      %v375 = vpack.c.b16 %v337, %v335
      %v376 = vpack.c.b16 %v338, %v336
      %v377 = vpack.c.b16 %v341, %v339
      %v378 = vpack.c.b16 %v342, %v340
      %v379 = vpack.c.b16 %v345, %v343
      %v380 = vpack.c.b16 %v346, %v344
      %v381 = vpack.c.b16 %v349, %v347
      %v382 = vpack.c.b16 %v350, %v348
      %v417 = vunpack.c.l.b16 %v237
      %v418 = vunpack.c.l.b16 %v238
      %v419 = vunpack.c.l.b16 %v239
      %v420 = vunpack.c.l.b16 %v240
      %v421 = vunpack.c.l.b16 %v241
      %v422 = vunpack.c.l.b16 %v242
      %v423 = vunpack.c.l.b16 %v243
      %v424 = vunpack.c.l.b16 %v244
      %v425 = vunpack.c.l.b16 %v245
      %v426 = vunpack.c.l.b16 %v246
      %v427 = vunpack.c.l.b16 %v247
      %v428 = vunpack.c.l.b16 %v248
      %v429 = vunpack.c.l.b16 %v249
      %v430 = vunpack.c.l.b16 %v250
      %v431 = vunpack.c.l.b16 %v251
      %v432 = vunpack.c.l.b16 %v252
      %v433 = vunpack.c.l.b16 %v253
      %v434 = vunpack.c.l.b16 %v254
      %v435 = vpack.c.b16 %v418, %v417
      %v436 = vpack.c.b16 %v420, %v419
      %v437 = vpack.c.b16 %v422, %v421
      %v438 = vpack.c.b16 %v424, %v423
      %v439 = vpack.c.b16 %v426, %v425
      %v440 = vpack.c.b16 %v428, %v427
      %v441 = vpack.c.b16 %v430, %v429
      %v442 = vpack.c.b16 %v432, %v431
      %v443 = vpack.c.b16 %v434, %v433
      %vm453 = vcmask 130048
      %v455 = vsel %vm453, %v352, 0
      %v458 = vsel %vm453, %v354, 0
      %v461 = vsel %vm453, %v356, 0
      %v464 = vsel %vm453, %v358, 0
      %v467 = vsel %vm453, %v360, 0
      %v470 = vsel %vm453, %v362, 0
      %v473 = vsel %vm453, %v364, 0
      %v476 = vsel %vm453, %v366, 0
      %v479 = vsel %vm453, %v368, 0
      %v482 = vsel %vm453, %v370, 0
      %v485 = vsel %vm453, %v372, 0
      %v488 = vsel %vm453, %v374, 0
      %v491 = vsel %vm453, %v376, 0
      %v494 = vsel %vm453, %v378, 0
      %v497 = vsel %vm453, %v380, 0
      %v500 = vsel %vm453, %v382, 0
      %502 = vmatprep.subr.bf16.mxu0 0
      %503 = vmatpush1.bf16.msra.mxu0 %v442
      %504 = vmatprep.subr.bf16.mxu0 0
      %505 = vmatpush1.bf16.msra.mxu0 %v441
      %506 = vmatprep.subr.bf16.mxu0 0
      %507 = vmatpush1.bf16.msra.mxu0 %v440
      %508 = vmatprep.subr.bf16.mxu0 0
      %509 = vmatpush1.bf16.msra.mxu0 %v439
      %510 = vmatprep.subr.bf16.mxu0 0
      %511 = vmatpush1.bf16.msra.mxu0 %v438
      %512 = vmatprep.subr.bf16.mxu0 0
      %513 = vmatpush1.bf16.msra.mxu0 %v437
      %514 = vmatprep.subr.bf16.mxu0 0
      %515 = vmatpush1.bf16.msra.mxu0 %v436
      %516 = vmatprep.subr.bf16.mxu0 0
      %517 = vmatpush1.bf16.msra.mxu0 %v435
      %518 = vmatprep.subr.bf16.mxu0 0
      %519 = vmatpush2.bf16.msra.mxu0 0
      %520 = vmatprep.subr.bf16.mxu0 0
      %521 = vmatpush2.bf16.msra.mxu0 0
      %522 = vmatprep.subr.bf16.mxu0 0
      %523 = vmatpush2.bf16.msra.mxu0 0
      %524 = vmatprep.subr.bf16.mxu0 0
      %525 = vmatpush2.bf16.msra.mxu0 0
      %526 = vmatprep.subr.bf16.mxu0 0
      %527 = vmatpush2.bf16.msra.mxu0 0
      %528 = vmatprep.subr.bf16.mxu0 0
      %529 = vmatpush2.bf16.msra.mxu0 0
      %530 = vmatprep.subr.bf16.mxu0 0
      %531 = vmatpush2.bf16.msra.mxu0 0
      %532 = vmatprep.subr.bf16.mxu0 0
      %533 = vmatpush2.bf16.msra.mxu0 %v443
      %534 = vmatprep.mubr.bf16.mxu0 %v455
      %535 = vmatmul.mubr.bf16.gmra.mxu0 %v351
      %v536 = vpop.f32.mrf.mxu0
      %v537 = vadd.f32 0.0, %v536
      %v538 = vpop.f32.mrf.mxu0
      %v539 = vpop.f32.mrf.mxu0
      %v540 = vadd.f32 0.0, %v539
      %v541 = vpop.f32.mrf.mxu0
      %542 = vmatprep.mubr.bf16.mxu0 %v458
      %543 = vmatmul.mubr.bf16.gmra.mxu0 %v353
      %v544 = vpop.f32.mrf.mxu0
      %v545 = vadd.f32 0.0, %v544
      %v546 = vpop.f32.mrf.mxu0
      %v547 = vpop.f32.mrf.mxu0
      %v548 = vadd.f32 0.0, %v547
      %v549 = vpop.f32.mrf.mxu0
      %550 = vmatprep.mubr.bf16.mxu0 %v461
      %551 = vmatmul.mubr.bf16.gmra.mxu0 %v355
      %v552 = vpop.f32.mrf.mxu0
      %v553 = vadd.f32 0.0, %v552
      %v554 = vpop.f32.mrf.mxu0
      %v555 = vpop.f32.mrf.mxu0
      %v556 = vadd.f32 0.0, %v555
      %v557 = vpop.f32.mrf.mxu0
      %558 = vmatprep.mubr.bf16.mxu0 %v464
      %559 = vmatmul.mubr.bf16.gmra.mxu0 %v357
      %v560 = vpop.f32.mrf.mxu0
      %v561 = vadd.f32 0.0, %v560
      %v562 = vpop.f32.mrf.mxu0
      %v563 = vpop.f32.mrf.mxu0
      %v564 = vadd.f32 0.0, %v563
      %v565 = vpop.f32.mrf.mxu0
      %566 = vmatprep.mubr.bf16.mxu0 %v467
      %567 = vmatmul.mubr.bf16.gmra.mxu0 %v359
      %v568 = vpop.f32.mrf.mxu0
      %v569 = vadd.f32 0.0, %v568
      %v570 = vpop.f32.mrf.mxu0
      %v571 = vpop.f32.mrf.mxu0
      %v572 = vadd.f32 0.0, %v571
      %v573 = vpop.f32.mrf.mxu0
      %574 = vmatprep.mubr.bf16.mxu0 %v470
      %575 = vmatmul.mubr.bf16.gmra.mxu0 %v361
      %v576 = vpop.f32.mrf.mxu0
      %v577 = vadd.f32 0.0, %v576
      %v578 = vpop.f32.mrf.mxu0
      %v579 = vpop.f32.mrf.mxu0
      %v580 = vadd.f32 0.0, %v579
      %v581 = vpop.f32.mrf.mxu0
      %582 = vmatprep.mubr.bf16.mxu0 %v473
      %583 = vmatmul.mubr.bf16.gmra.mxu0 %v363
      %v584 = vpop.f32.mrf.mxu0
      %v585 = vadd.f32 0.0, %v584
      %v586 = vpop.f32.mrf.mxu0
      %v587 = vpop.f32.mrf.mxu0
      %v588 = vadd.f32 0.0, %v587
      %v589 = vpop.f32.mrf.mxu0
      %590 = vmatprep.mubr.bf16.mxu0 %v476
      %591 = vmatmul.mubr.bf16.gmra.mxu0 %v365
      %v592 = vpop.f32.mrf.mxu0
      %v593 = vadd.f32 0.0, %v592
      %v594 = vpop.f32.mrf.mxu0
      %v595 = vpop.f32.mrf.mxu0
      %v596 = vadd.f32 0.0, %v595
      %v597 = vpop.f32.mrf.mxu0
      %598 = vmatprep.mubr.bf16.mxu0 %v479
      %599 = vmatmul.mubr.bf16.gmra.mxu0 %v367
      %v600 = vpop.f32.mrf.mxu0
      %v601 = vadd.f32 0.0, %v600
      %v602 = vpop.f32.mrf.mxu0
      %v603 = vpop.f32.mrf.mxu0
      %v604 = vadd.f32 0.0, %v603
      %v605 = vpop.f32.mrf.mxu0
      %606 = vmatprep.mubr.bf16.mxu0 %v482
      %607 = vmatmul.mubr.bf16.gmra.mxu0 %v369
      %v608 = vpop.f32.mrf.mxu0
      %v609 = vadd.f32 0.0, %v608
      %v610 = vpop.f32.mrf.mxu0
      %v611 = vpop.f32.mrf.mxu0
      %v612 = vadd.f32 0.0, %v611
      %v613 = vpop.f32.mrf.mxu0
      %614 = vmatprep.mubr.bf16.mxu0 %v485
      %615 = vmatmul.mubr.bf16.gmra.mxu0 %v371
      %v616 = vpop.f32.mrf.mxu0
      %v617 = vadd.f32 0.0, %v616
      %v618 = vpop.f32.mrf.mxu0
      %v619 = vpop.f32.mrf.mxu0
      %v620 = vadd.f32 0.0, %v619
      %v621 = vpop.f32.mrf.mxu0
      %622 = vmatprep.mubr.bf16.mxu0 %v488
      %623 = vmatmul.mubr.bf16.gmra.mxu0 %v373
      %v624 = vpop.f32.mrf.mxu0
      %v625 = vadd.f32 0.0, %v624
      %v626 = vpop.f32.mrf.mxu0
      %v627 = vpop.f32.mrf.mxu0
      %v628 = vadd.f32 0.0, %v627
      %v629 = vpop.f32.mrf.mxu0
      %630 = vmatprep.mubr.bf16.mxu0 %v491
      %631 = vmatmul.mubr.bf16.gmra.mxu0 %v375
      %v632 = vpop.f32.mrf.mxu0
      %v633 = vadd.f32 0.0, %v632
      %v634 = vpop.f32.mrf.mxu0
      %v635 = vpop.f32.mrf.mxu0
      %v636 = vadd.f32 0.0, %v635
      %v637 = vpop.f32.mrf.mxu0
      %638 = vmatprep.mubr.bf16.mxu0 %v494
      %639 = vmatmul.mubr.bf16.gmra.mxu0 %v377
      %v640 = vpop.f32.mrf.mxu0
      %v641 = vadd.f32 0.0, %v640
      %v642 = vpop.f32.mrf.mxu0
      %v643 = vpop.f32.mrf.mxu0
      %v644 = vadd.f32 0.0, %v643
      %v645 = vpop.f32.mrf.mxu0
      %646 = vmatprep.mubr.bf16.mxu0 %v497
      %647 = vmatmul.mubr.bf16.gmra.mxu0 %v379
      %v648 = vpop.f32.mrf.mxu0
      %v649 = vadd.f32 0.0, %v648
      %v650 = vpop.f32.mrf.mxu0
      %v651 = vpop.f32.mrf.mxu0
      %v652 = vadd.f32 0.0, %v651
      %v653 = vpop.f32.mrf.mxu0
      %654 = vmatprep.mubr.bf16.mxu0 %v500
      %655 = vmatmul.mubr.bf16.gmra.mxu0 %v381
      %v656 = vpop.f32.mrf.mxu0
      %v657 = vadd.f32 0.0, %v656
      %v658 = vpop.f32.mrf.mxu0
      %v659 = vpop.f32.mrf.mxu0
      %v660 = vadd.f32 0.0, %v659
      %v661 = vpop.f32.mrf.mxu0
      %662 = vdwg.mxu0
      %v663 = vld [vmem:[%s2] sm:$0x1]
      %v665 = vlaneseq
      %v666 = vshrl.u32 %v665, 7
      %v667 = vsub.s32 0, %v666
      %v668 = vrot.slane %v663, %v667
      %v670 = vmul.f32 %v537, %v668
      %v671 = vmul.f32 %v540, %v668
      %v672 = vmul.f32 %v545, %v668
      %v673 = vmul.f32 %v548, %v668
      %v674 = vmul.f32 %v553, %v668
      %v675 = vmul.f32 %v556, %v668
      %v676 = vmul.f32 %v561, %v668
      %v677 = vmul.f32 %v564, %v668
      %v678 = vmul.f32 %v569, %v668
      %v679 = vmul.f32 %v572, %v668
      %v680 = vmul.f32 %v577, %v668
      %v681 = vmul.f32 %v580, %v668
      %v682 = vmul.f32 %v585, %v668
      %v683 = vmul.f32 %v588, %v668
      %v684 = vmul.f32 %v593, %v668
      %v685 = vmul.f32 %v596, %v668
      %v686 = vmul.f32 %v601, %v668
      %v687 = vmul.f32 %v604, %v668
      %v688 = vmul.f32 %v609, %v668
      %v689 = vmul.f32 %v612, %v668
      %v690 = vmul.f32 %v617, %v668
      %v691 = vmul.f32 %v620, %v668
      %v692 = vmul.f32 %v625, %v668
      %v693 = vmul.f32 %v628, %v668
      %v694 = vmul.f32 %v633, %v668
      %v695 = vmul.f32 %v636, %v668
      %v696 = vmul.f32 %v641, %v668
      %v697 = vmul.f32 %v644, %v668
      %v698 = vmul.f32 %v649, %v668
      %v699 = vmul.f32 %v652, %v668
      %v700 = vmul.f32 %v657, %v668
      %v701 = vmul.f32 %v660, %v668
      %v702 = vld [vmem:[%s3] sm:$0x1]
      %v704 = vlaneseq
      %v705 = vshrl.u32 %v704, 7
      %v706 = vsub.s32 0, %v705
      %v707 = vrot.slane %v702, %v706
      %v709 = vadd.f32 %v670, %v707
      %v710 = vadd.f32 %v671, %v707
      %v711 = vadd.f32 %v672, %v707
      %v712 = vadd.f32 %v673, %v707
      %v713 = vadd.f32 %v674, %v707
      %v714 = vadd.f32 %v675, %v707
      %v715 = vadd.f32 %v676, %v707
      %v716 = vadd.f32 %v677, %v707
      %v717 = vadd.f32 %v678, %v707
      %v718 = vadd.f32 %v679, %v707
      %v719 = vadd.f32 %v680, %v707
      %v720 = vadd.f32 %v681, %v707
      %v721 = vadd.f32 %v682, %v707
      %v722 = vadd.f32 %v683, %v707
      %v723 = vadd.f32 %v684, %v707
      %v724 = vadd.f32 %v685, %v707
      %v725 = vadd.f32 %v686, %v707
      %v726 = vadd.f32 %v687, %v707
      %v727 = vadd.f32 %v688, %v707
      %v728 = vadd.f32 %v689, %v707
      %v729 = vadd.f32 %v690, %v707
      %v730 = vadd.f32 %v691, %v707
      %v731 = vadd.f32 %v692, %v707
      %v732 = vadd.f32 %v693, %v707
      %v733 = vadd.f32 %v694, %v707
      %v734 = vadd.f32 %v695, %v707
      %v735 = vadd.f32 %v696, %v707
      %v736 = vadd.f32 %v697, %v707
      %v737 = vadd.f32 %v698, %v707
      %v738 = vadd.f32 %v699, %v707
      %v739 = vadd.f32 %v700, %v707
      %v740 = vadd.f32 %v701, %v707
      %v741 = vmax.f32 %v709, 0.0
      %v742 = vmax.f32 %v710, 0.0
      %v743 = vmax.f32 %v711, 0.0
      %v744 = vmax.f32 %v712, 0.0
      %v745 = vmax.f32 %v713, 0.0
      %v746 = vmax.f32 %v714, 0.0
      %v747 = vmax.f32 %v715, 0.0
      %v748 = vmax.f32 %v716, 0.0
      %v749 = vmax.f32 %v717, 0.0
      %v750 = vmax.f32 %v718, 0.0
      %v751 = vmax.f32 %v719, 0.0
      %v752 = vmax.f32 %v720, 0.0
      %v753 = vmax.f32 %v721, 0.0
      %v754 = vmax.f32 %v722, 0.0
      %v755 = vmax.f32 %v723, 0.0
      %v756 = vmax.f32 %v724, 0.0
      %v757 = vmax.f32 %v725, 0.0
      %v758 = vmax.f32 %v726, 0.0
      %v759 = vmax.f32 %v727, 0.0
      %v760 = vmax.f32 %v728, 0.0
      %v761 = vmax.f32 %v729, 0.0
      %v762 = vmax.f32 %v730, 0.0
      %v763 = vmax.f32 %v731, 0.0
      %v764 = vmax.f32 %v732, 0.0
      %v765 = vmax.f32 %v733, 0.0
      %v766 = vmax.f32 %v734, 0.0
      %v767 = vmax.f32 %v735, 0.0
      %v768 = vmax.f32 %v736, 0.0
      %v769 = vmax.f32 %v737, 0.0
      %v770 = vmax.f32 %v738, 0.0
      %v771 = vmax.f32 %v739, 0.0
      %v772 = vmax.f32 %v740, 0.0
      %v773 = vmax.f32 %v741, %v749
      %v774 = vmax.f32 %v742, %v750
      %v775 = vmax.f32 %v743, %v751
      %v776 = vmax.f32 %v744, %v752
      %v777 = vmax.f32 %v745, %v753
      %v778 = vmax.f32 %v746, %v754
      %v779 = vmax.f32 %v747, %v755
      %v780 = vmax.f32 %v748, %v756
      %v781 = vmax.f32 %v773, %v757
      %v782 = vmax.f32 %v774, %v758
      %v783 = vmax.f32 %v775, %v759
      %v784 = vmax.f32 %v776, %v760
      %v785 = vmax.f32 %v777, %v761
      %v786 = vmax.f32 %v778, %v762
      %v787 = vmax.f32 %v779, %v763
      %v788 = vmax.f32 %v780, %v764
      %v789 = vmax.f32 %v781, %v765
      %v790 = vmax.f32 %v782, %v766
      %v791 = vmax.f32 %v783, %v767
      %v792 = vmax.f32 %v784, %v768
      %v793 = vmax.f32 %v785, %v769
      %v794 = vmax.f32 %v786, %v770
      %v795 = vmax.f32 %v787, %v771
      %v796 = vmax.f32 %v788, %v772
      %797 = vst [vmem:[%s202] sm:$0xff] %v789
      %798 = vst [vmem:[%s202 + $0x8] sm:$0xff] %v790
      %799 = vst [vmem:[%s202 + $0x10] sm:$0xff] %v791
      %800 = vst [vmem:[%s202 + $0x18] sm:$0xff] %v792
      %801 = vst [vmem:[%s202 + $0x20] sm:$0xff] %v793
      %802 = vst [vmem:[%s202 + $0x28] sm:$0xff] %v794
      %803 = vst [vmem:[%s202 + $0x30] sm:$0xff] %v795
      %804 = vst [vmem:[%s202 + $0x38] sm:$0xff] %v796
      %s805 = smul.u32 8, %s15
      %p806 = scmp.lt.s32.totalorder %s805, 15
      %s807 = scalar_select %p806, %s805, 15
      %s808 = smul.addr %s807, 8
      %s809 = scalar_lea.vmem %s4, %s808
      // Predicated region
      $region37: #{_lambda_.5} parent=35 // pred_check
        %p810 = pneg %p122
      $region38: #{_lambda_.5} parent=35 // pred_check_branch
        %812 = sbr.rel (%p810) target = $region40
      $region39: #{_lambda_.5} parent=35 // pred_region
        %s813 = smul.u32 8, %s15
      $region40: #{_lambda_.5} parent=35 // pred_fallthru
        _
    $region36: #{_lambda_.5} parent=5 // pred_fallthru
      _
    %p814 = scmp.le.s32.totalorder 2, %s10
    // Predicated region
    $region41: #{_lambda_.5} parent=5 // pred_check
      %p815 = pneg %p814
    $region42: #{_lambda_.5} parent=5 // pred_check_branch
      %817 = sbr.rel (%p815) target = $region44
    $region43: #{_lambda_.5} parent=5 // pred_region
      %s818 = ssub.s32 %s10, 2
      // Predicated region
      $region45: #{_lambda_.5} parent=43 // pred_check
        %p819 = pneg %p128
      $region46: #{_lambda_.5} parent=43 // pred_check_branch
        %821 = sbr.rel (%p819) target = $region48
      $region47: #{_lambda_.5} parent=43 // pred_region
        %s822 = smul.u32 8, %s16
        %p823 = scmp.lt.s32.totalorder %s822, 15
        %s824 = scalar_select %p823, %s822, 15
        %s825 = smul.addr %s824, 8
        %s826 = scalar_lea.vmem %s4, %s825
      $region48: #{_lambda_.5} parent=43 // pred_fallthru
        _
    $region44: #{_lambda_.5} parent=5 // pred_fallthru
      _
  $region6: #{_lambda_.5} parent=0 // loop_footer
    %s14 = sadd.s32 1, %s10
  $region7: #{_lambda_.5} parent=0 // loop_footer_branch
    %9 = sbr.rel target = $region3
  $region8: #{_lambda_.5} parent=0 // loop_exit
    _

// kernel: _lambda_.6
$region0: #{_lambda_.6}
  #allocation0 [shape = 'u32[]', space=smem, size = 0x4, offset = 0x4, fixed_abs, tag = 'smem constant byte address 0x4 - core index']
  #allocation1 [shape = 'u32[144,128]{1,0:T(1,128)}', space=vmem, size = 0x12000, scoped, tag = 'internal scratch']
  %s0 = inlined_call_operand.vmem [shape: bf16[96,72], index: 0, kind: input, shape index: {}]
  %s1 = inlined_call_operand.vmem [shape: bf16[72,128], index: 1, kind: input, shape index: {}]
  %s2 = inlined_call_operand.vmem [shape: f32[1,128], index: 2, kind: input, shape index: {}]
  %s3 = inlined_call_operand.vmem [shape: f32[1,128], index: 3, kind: input, shape index: {}]
  %s4 = inlined_call_operand.vmem [shape: f32[24,128], index: 4, kind: output, shape index: {}]
  %s5 = sld [smem:[#allocation0]]
  $region26: #{_lambda_.6} parent=0
    _
  %s7 = ssub.s32 1, %s5
  %s8 = scalar_select 0, %s7, %s5
  // Predicated region
  $region2: #{_lambda_.6} parent=0 // pred_check
    _
  $region3: #{_lambda_.6} parent=0 // pred_check_branch
    %10 = sbr.rel (0) target = $region5
  $region4: #{_lambda_.6} parent=0 // pred_region
    _
  $region5: #{_lambda_.6} parent=0 // pred_fallthru
    _
  // Predicated region
  $region6: #{_lambda_.6} parent=0 // pred_check
    _
  $region7: #{_lambda_.6} parent=0 // pred_check_branch
    %12 = sbr.rel (0) target = $region9
  $region8: #{_lambda_.6} parent=0 // pred_region
    _
  $region9: #{_lambda_.6} parent=0 // pred_fallthru
    _
  // Predicated region
  $region10: #{_lambda_.6} parent=0 // pred_check
    _
  $region11: #{_lambda_.6} parent=0 // pred_check_branch
    %14 = sbr.rel (0) target = $region13
  $region12: #{_lambda_.6} parent=0 // pred_region
    _
  $region13: #{_lambda_.6} parent=0 // pred_fallthru
    _
  // Predicated region
  $region14: #{_lambda_.6} parent=0 // pred_check
    _
  $region15: #{_lambda_.6} parent=0 // pred_check_branch
    %16 = sbr.rel (0) target = $region17
  $region16: #{_lambda_.6} parent=0 // pred_region
    _
  $region17: #{_lambda_.6} parent=0 // pred_fallthru
    _
  %v18 = vld [vmem:[%s0] sm:$0xf]
  %v19 = vld [vmem:[%s0 + $0x4] sm:$0xf]
  %v20 = vld [vmem:[%s0 + $0x8] sm:$0xf]
  %v21 = vld [vmem:[%s0 + $0xc] sm:$0xf]
  %v22 = vld [vmem:[%s0 + $0x10] sm:$0xf]
  %v23 = vld [vmem:[%s0 + $0x14] sm:$0xf]
  %v24 = vld [vmem:[%s0 + $0x18] sm:$0xf]
  %v25 = vld [vmem:[%s0 + $0x1c] sm:$0xf]
  %v26 = vld [vmem:[%s0 + $0x20] sm:$0xf]
  %v27 = vld [vmem:[%s0 + $0x24] sm:$0xf]
  %v28 = vld [vmem:[%s0 + $0x28] sm:$0xf]
  %v29 = vld [vmem:[%s0 + $0x2c] sm:$0xf]
  %v30 = vld [vmem:[%s1] sm:$0xf]
  %v31 = vld [vmem:[%s1 + $0x4] sm:$0xf]
  %v32 = vld [vmem:[%s1 + $0x8] sm:$0xf]
  %v33 = vld [vmem:[%s1 + $0xc] sm:$0xf]
  %v34 = vld [vmem:[%s1 + $0x10] sm:$0xf]
  %v35 = vld [vmem:[%s1 + $0x14] sm:$0xf]
  %v36 = vld [vmem:[%s1 + $0x18] sm:$0xf]
  %v37 = vld [vmem:[%s1 + $0x1c] sm:$0xf]
  %v38 = vld [vmem:[%s1 + $0x20] sm:$0xf]
  %v51 = vunpack.c.l.b16 %v18
  %v52 = vunpack.c.l.b16 %v19
  %v53 = vunpack.c.l.b16 %v20
  %v54 = vunpack.c.l.b16 %v21
  %v55 = vunpack.c.l.b16 %v22
  %v56 = vunpack.c.l.b16 %v23
  %v57 = vunpack.c.l.b16 %v24
  %v58 = vunpack.c.l.b16 %v25
  %v59 = vunpack.c.l.b16 %v26
  %v60 = vunpack.c.l.b16 %v27
  %v61 = vunpack.c.l.b16 %v28
  %v62 = vunpack.c.l.b16 %v29
  %v63 = vpack.c.b16 %v52, %v51
  %v64 = vpack.c.b16 %v54, %v53
  %v65 = vpack.c.b16 %v56, %v55
  %v66 = vpack.c.b16 %v58, %v57
  %v67 = vpack.c.b16 %v60, %v59
  %v68 = vpack.c.b16 %v62, %v61
  %v78 = vunpack.c.l.b16 %v30
  %v79 = vunpack.c.l.b16 %v31
  %v80 = vunpack.c.l.b16 %v32
  %v81 = vunpack.c.l.b16 %v33
  %v82 = vunpack.c.l.b16 %v34
  %v83 = vunpack.c.l.b16 %v35
  %v84 = vunpack.c.l.b16 %v36
  %v85 = vunpack.c.l.b16 %v37
  %v86 = vunpack.c.l.b16 %v38
  %v87 = vpack.c.b16 %v79, %v78
  %v88 = vpack.c.b16 %v81, %v80
  %v89 = vpack.c.b16 %v83, %v82
  %v90 = vpack.c.b16 %v85, %v84
  %v91 = vpack.c.b16 %v86, %v86
  %vm96 = vcmask 588800
  %v98 = vsel %vm96, %v63, 0
  %v101 = vsel %vm96, %v64, 0
  %v104 = vsel %vm96, %v65, 0
  %v107 = vsel %vm96, %v66, 0
  %v110 = vsel %vm96, %v67, 0
  %v113 = vsel %vm96, %v68, 0
  %vm115 = vcmask 1043456
  %v117 = vsel %vm115, %v91, 0
  %119 = vmatprep.subr.bf16.mxu0 0
  %120 = vmatpush1.bf16.msra.mxu0 0
  %121 = vmatprep.subr.bf16.mxu0 0
  %122 = vmatpush1.bf16.msra.mxu0 0
  %123 = vmatprep.subr.bf16.mxu0 0
  %124 = vmatpush1.bf16.msra.mxu0 0
  %125 = vmatprep.subr.bf16.mxu0 0
  %126 = vmatpush1.bf16.msra.mxu0 %v117
  %127 = vmatprep.subr.bf16.mxu0 0
  %128 = vmatpush1.bf16.msra.mxu0 %v90
  %129 = vmatprep.subr.bf16.mxu0 0
  %130 = vmatpush1.bf16.msra.mxu0 %v89
  %131 = vmatprep.subr.bf16.mxu0 0
  %132 = vmatpush1.bf16.msra.mxu0 %v88
  %133 = vmatprep.subr.bf16.mxu0 0
  %134 = vmatpush1.bf16.msra.mxu0 %v87
  %135 = vmatprep.subr.bf16.mxu0 0
  %136 = vmatpush2.bf16.msra.mxu0 0
  %137 = vmatprep.subr.bf16.mxu0 0
  %138 = vmatpush2.bf16.msra.mxu0 0
  %139 = vmatprep.subr.bf16.mxu0 0
  %140 = vmatpush2.bf16.msra.mxu0 0
  %141 = vmatprep.subr.bf16.mxu0 0
  %142 = vmatpush2.bf16.msra.mxu0 0
  %143 = vmatprep.subr.bf16.mxu0 0
  %144 = vmatpush2.bf16.msra.mxu0 0
  %145 = vmatprep.subr.bf16.mxu0 0
  %146 = vmatpush2.bf16.msra.mxu0 0
  %147 = vmatprep.subr.bf16.mxu0 0
  %148 = vmatpush2.bf16.msra.mxu0 0
  %149 = vmatprep.subr.bf16.mxu0 0
  %150 = vmatpush2.bf16.msra.mxu0 0
  %151 = vmatprep.mubr.bf16.mxu0 0
  %152 = vmatmul.mubr.bf16.gmra.mxu0 %v98
  %v153 = vpop.f32.mrf.mxu0
  %v154 = vadd.f32 0.0, %v153
  %v155 = vpop.f32.mrf.mxu0
  %v156 = vpop.f32.mrf.mxu0
  %v157 = vadd.f32 0.0, %v156
  %v158 = vpop.f32.mrf.mxu0
  %159 = vmatprep.mubr.bf16.mxu0 0
  %160 = vmatmul.mubr.bf16.gmra.mxu0 %v101
  %v161 = vpop.f32.mrf.mxu0
  %v162 = vadd.f32 0.0, %v161
  %v163 = vpop.f32.mrf.mxu0
  %v164 = vpop.f32.mrf.mxu0
  %v165 = vadd.f32 0.0, %v164
  %v166 = vpop.f32.mrf.mxu0
  %167 = vmatprep.mubr.bf16.mxu0 0
  %168 = vmatmul.mubr.bf16.gmra.mxu0 %v104
  %v169 = vpop.f32.mrf.mxu0
  %v170 = vadd.f32 0.0, %v169
  %v171 = vpop.f32.mrf.mxu0
  %v172 = vpop.f32.mrf.mxu0
  %v173 = vadd.f32 0.0, %v172
  %v174 = vpop.f32.mrf.mxu0
  %175 = vmatprep.mubr.bf16.mxu0 0
  %176 = vmatmul.mubr.bf16.gmra.mxu0 %v107
  %v177 = vpop.f32.mrf.mxu0
  %v178 = vadd.f32 0.0, %v177
  %v179 = vpop.f32.mrf.mxu0
  %v180 = vpop.f32.mrf.mxu0
  %v181 = vadd.f32 0.0, %v180
  %v182 = vpop.f32.mrf.mxu0
  %183 = vmatprep.mubr.bf16.mxu0 0
  %184 = vmatmul.mubr.bf16.gmra.mxu0 %v110
  %v185 = vpop.f32.mrf.mxu0
  %v186 = vadd.f32 0.0, %v185
  %v187 = vpop.f32.mrf.mxu0
  %v188 = vpop.f32.mrf.mxu0
  %v189 = vadd.f32 0.0, %v188
  %v190 = vpop.f32.mrf.mxu0
  %191 = vmatprep.mubr.bf16.mxu0 0
  %192 = vmatmul.mubr.bf16.gmra.mxu0 %v113
  %v193 = vpop.f32.mrf.mxu0
  %v194 = vadd.f32 0.0, %v193
  %v195 = vpop.f32.mrf.mxu0
  %v196 = vpop.f32.mrf.mxu0
  %v197 = vadd.f32 0.0, %v196
  %v198 = vpop.f32.mrf.mxu0
  %199 = vdwg.mxu0
  %v200 = vadd.f32 %v154, %v157
  %v201 = vadd.f32 %v200, %v162
  %v202 = vadd.f32 %v201, %v165
  %v203 = vadd.f32 %v202, %v170
  %v204 = vadd.f32 %v203, %v173
  %v205 = vadd.f32 %v204, %v178
  %v206 = vadd.f32 %v205, %v181
  %v207 = vadd.f32 %v206, %v186
  %v208 = vadd.f32 %v207, %v189
  %v209 = vadd.f32 %v208, %v194
  %v210 = vadd.f32 %v209, %v197
  %v211 = vrot.slane %v210, 4
  %v212 = vadd.f32 %v210, %v211
  %v213 = vrot.slane %v212, 2
  %v214 = vadd.f32 %v212, %v213
  %v215 = vrot.slane %v214, 1
  %v216 = vadd.f32 %v214, %v215
  %v217 = vmul.f32 %v154, %v154
  %v218 = vmul.f32 %v157, %v157
  %v219 = vmul.f32 %v162, %v162
  %v220 = vmul.f32 %v165, %v165
  %v221 = vmul.f32 %v170, %v170
  %v222 = vmul.f32 %v173, %v173
  %v223 = vmul.f32 %v178, %v178
  %v224 = vmul.f32 %v181, %v181
  %v225 = vmul.f32 %v186, %v186
  %v226 = vmul.f32 %v189, %v189
  %v227 = vmul.f32 %v194, %v194
  %v228 = vmul.f32 %v197, %v197
  %v229 = vadd.f32 %v217, %v218
  %v230 = vadd.f32 %v229, %v219
  %v231 = vadd.f32 %v230, %v220
  %v232 = vadd.f32 %v231, %v221
  %v233 = vadd.f32 %v232, %v222
  %v234 = vadd.f32 %v233, %v223
  %v235 = vadd.f32 %v234, %v224
  %v236 = vadd.f32 %v235, %v225
  %v237 = vadd.f32 %v236, %v226
  %v238 = vadd.f32 %v237, %v227
  %v239 = vadd.f32 %v238, %v228
  %v240 = vrot.slane %v239, 4
  %v241 = vadd.f32 %v239, %v240
  %v242 = vrot.slane %v241, 2
  %v243 = vadd.f32 %v241, %v242
  %v244 = vrot.slane %v243, 1
  %v245 = vadd.f32 %v243, %v244
  %v246 = vmul.f32 %v216, 0.013888889
  %v247 = vmul.f32 %v245, 0.013888889
  %v248 = vmul.f32 %v246, %v246
  %v249 = vsub.f32 %v247, %v248
  %v250 = vmax.f32 %v249, 0.0
  %v251 = vadd.f32 %v250, 1e-05
  %v252 = vrsqrt.pop %v251
  %v253 = vld [vmem:[%s2] sm:$0x1]
  %v254 = vmul.f32 %v252, %v253
  %v255 = vld [vmem:[%s3] sm:$0x1]
  %v256 = vmul.f32 %v246, %v254
  %v257 = vsub.f32 %v255, %v256
  %v258 = vlaneseq
  %v259 = vshrl.u32 %v258, 7
  %v260 = vsub.s32 0, %v259
  %v261 = vrot.slane %v254, %v260
  %v262 = vmul.f32 %v154, %v261
  %v263 = vmul.f32 %v157, %v261
  %v264 = vmul.f32 %v162, %v261
  %v265 = vmul.f32 %v165, %v261
  %v266 = vmul.f32 %v170, %v261
  %v267 = vmul.f32 %v173, %v261
  %v268 = vmul.f32 %v178, %v261
  %v269 = vmul.f32 %v181, %v261
  %v270 = vmul.f32 %v186, %v261
  %v271 = vmul.f32 %v189, %v261
  %v272 = vmul.f32 %v194, %v261
  %v273 = vmul.f32 %v197, %v261
  %v275 = vlaneseq
  %v276 = vshrl.u32 %v275, 7
  %v277 = vsub.s32 0, %v276
  %v278 = vrot.slane %v257, %v277
  %v280 = vadd.f32 %v262, %v278
  %v281 = vadd.f32 %v263, %v278
  %v282 = vadd.f32 %v264, %v278
  %v283 = vadd.f32 %v265, %v278
  %v284 = vadd.f32 %v266, %v278
  %v285 = vadd.f32 %v267, %v278
  %v286 = vadd.f32 %v268, %v278
  %v287 = vadd.f32 %v269, %v278
  %v288 = vadd.f32 %v270, %v278
  %v289 = vadd.f32 %v271, %v278
  %v290 = vadd.f32 %v272, %v278
  %v291 = vadd.f32 %v273, %v278
  %v292 = vmax.f32 %v280, 0.0
  %v293 = vmax.f32 %v281, 0.0
  %v294 = vmax.f32 %v282, 0.0
  %v295 = vmax.f32 %v283, 0.0
  %v296 = vmax.f32 %v284, 0.0
  %v297 = vmax.f32 %v285, 0.0
  %v298 = vmax.f32 %v286, 0.0
  %v299 = vmax.f32 %v287, 0.0
  %v300 = vmax.f32 %v288, 0.0
  %v301 = vmax.f32 %v289, 0.0
  %v302 = vmax.f32 %v290, 0.0
  %v303 = vmax.f32 %v291, 0.0
  %v304 = vmax.f32 %v292, %v295
  %v305 = vmax.f32 %v293, %v296
  %v306 = vmax.f32 %v294, %v297
  %v307 = vmax.f32 %v304, %v298
  %v308 = vmax.f32 %v305, %v299
  %v309 = vmax.f32 %v306, %v300
  %v310 = vmax.f32 %v307, %v301
  %v311 = vmax.f32 %v308, %v302
  %v312 = vmax.f32 %v309, %v303
  %313 = vst [vmem:[%s4] sm:$0xff] %v310
  %314 = vst [vmem:[%s4 + $0x8] sm:$0xff] %v311
  %315 = vst [vmem:[%s4 + $0x10] sm:$0xff] %v312
  // Predicated region
  $region18: #{_lambda_.6} parent=0 // pred_check
    _
  $region19: #{_lambda_.6} parent=0 // pred_check_branch
    %317 = sbr.rel (0) target = $region21
  $region20: #{_lambda_.6} parent=0 // pred_region
    _
  $region21: #{_lambda_.6} parent=0 // pred_fallthru
    _
  // Predicated region
  $region22: #{_lambda_.6} parent=0 // pred_check
    _
  $region23: #{_lambda_.6} parent=0 // pred_check_branch
    %319 = sbr.rel (0) target = $region25
  $region24: #{_lambda_.6} parent=0 // pred_region
    _
  $region25: #{_lambda_.6} parent=0 // pred_fallthru
    _

// kernel: _lambda_.7
$region0: #{_lambda_.7}
  #allocation0 [shape = 'u32[]', space=smem, size = 0x4, offset = 0x4, fixed_abs, tag = 'smem constant byte address 0x4 - core index']
  #allocation1 [shape = 'u32[144,128]{1,0:T(1,128)}', space=vmem, size = 0x12000, scoped, tag = 'internal scratch']
  %s0 = inlined_call_operand.vmem [shape: f32[8,72], index: 0, kind: input, shape index: {}]
  %s1 = inlined_call_operand.vmem [shape: f32[72,128], index: 1, kind: input, shape index: {}]
  %s2 = inlined_call_operand.vmem [shape: f32[1,128], index: 2, kind: input, shape index: {}]
  %s3 = inlined_call_operand.vmem [shape: f32[128,8], index: 3, kind: input, shape index: {}]
  %s4 = inlined_call_operand.vmem [shape: f32[1,8], index: 4, kind: input, shape index: {}]
  %s5 = inlined_call_operand.vmem [shape: f32[8,8], index: 5, kind: output, shape index: {}]
  %s6 = sld [smem:[#allocation0]]
  $region30: #{_lambda_.7} parent=0
    _
  %s8 = ssub.s32 1, %s6
  %s9 = scalar_select 0, %s8, %s6
  // Predicated region
  $region2: #{_lambda_.7} parent=0 // pred_check
    _
  $region3: #{_lambda_.7} parent=0 // pred_check_branch
    %11 = sbr.rel (0) target = $region5
  $region4: #{_lambda_.7} parent=0 // pred_region
    _
  $region5: #{_lambda_.7} parent=0 // pred_fallthru
    _
  // Predicated region
  $region6: #{_lambda_.7} parent=0 // pred_check
    _
  $region7: #{_lambda_.7} parent=0 // pred_check_branch
    %13 = sbr.rel (0) target = $region9
  $region8: #{_lambda_.7} parent=0 // pred_region
    _
  $region9: #{_lambda_.7} parent=0 // pred_fallthru
    _
  // Predicated region
  $region10: #{_lambda_.7} parent=0 // pred_check
    _
  $region11: #{_lambda_.7} parent=0 // pred_check_branch
    %15 = sbr.rel (0) target = $region13
  $region12: #{_lambda_.7} parent=0 // pred_region
    _
  $region13: #{_lambda_.7} parent=0 // pred_fallthru
    _
  // Predicated region
  $region14: #{_lambda_.7} parent=0 // pred_check
    _
  $region15: #{_lambda_.7} parent=0 // pred_check_branch
    %17 = sbr.rel (0) target = $region17
  $region16: #{_lambda_.7} parent=0 // pred_region
    _
  $region17: #{_lambda_.7} parent=0 // pred_fallthru
    _
  // Predicated region
  $region18: #{_lambda_.7} parent=0 // pred_check
    _
  $region19: #{_lambda_.7} parent=0 // pred_check_branch
    %19 = sbr.rel (0) target = $region21
  $region20: #{_lambda_.7} parent=0 // pred_region
    _
  $region21: #{_lambda_.7} parent=0 // pred_fallthru
    _
  %v20 = vld [vmem:[%s0] sm:$0xff]
  %v21 = vld [vmem:[%s1] sm:$0xff]
  %v22 = vld [vmem:[%s1 + $0x8] sm:$0xff]
  %v23 = vld [vmem:[%s1 + $0x10] sm:$0xff]
  %v24 = vld [vmem:[%s1 + $0x18] sm:$0xff]
  %v25 = vld [vmem:[%s1 + $0x20] sm:$0xff]
  %v26 = vld [vmem:[%s1 + $0x28] sm:$0xff]
  %v27 = vld [vmem:[%s1 + $0x30] sm:$0xff]
  %v28 = vld [vmem:[%s1 + $0x38] sm:$0xff]
  %v29 = vld [vmem:[%s1 + $0x40] sm:$0xff]
  %v30 = vld [vmem:[%s2] sm:$0x1]
  %v32 = vlaneseq
  %v33 = vshrl.u32 %v32, 7
  %v34 = vsub.s32 0, %v33
  %v35 = vrot.slane %v30, %v34
  %vm37 = vcmask 588800
  %v39 = vsel %vm37, %v20, 0
  %41 = vmatprep.subr.mxu0 0.0
  %42 = vmatpush1.msra.mxu0 0.0
  %43 = vmatprep.subr.mxu0 0.0
  %44 = vmatpush1.msra.mxu0 0.0
  %45 = vmatprep.subr.mxu0 0.0
  %46 = vmatpush1.msra.mxu0 0.0
  %47 = vmatprep.subr.mxu0 0.0
  %48 = vmatpush1.msra.mxu0 0.0
  %49 = vmatprep.subr.mxu0 0.0
  %50 = vmatpush1.msra.mxu0 0.0
  %51 = vmatprep.subr.mxu0 0.0
  %52 = vmatpush1.msra.mxu0 0.0
  %53 = vmatprep.subr.mxu0 0.0
  %54 = vmatpush1.msra.mxu0 0.0
  %55 = vmatprep.subr.mxu0 0.0
  %56 = vmatpush1.msra.mxu0 %v29
  %57 = vmatprep.subr.mxu0 0.0
  %58 = vmatpush1.msra.mxu0 %v28
  %59 = vmatprep.subr.mxu0 0.0
  %60 = vmatpush1.msra.mxu0 %v27
  %61 = vmatprep.subr.mxu0 0.0
  %62 = vmatpush1.msra.mxu0 %v26
  %63 = vmatprep.subr.mxu0 0.0
  %64 = vmatpush1.msra.mxu0 %v25
  %65 = vmatprep.subr.mxu0 0.0
  %66 = vmatpush1.msra.mxu0 %v24
  %67 = vmatprep.subr.mxu0 0.0
  %68 = vmatpush1.msra.mxu0 %v23
  %69 = vmatprep.subr.mxu0 0.0
  %70 = vmatpush1.msra.mxu0 %v22
  %71 = vmatprep.subr.mxu0 0.0
  %72 = vmatpush1.msra.mxu0 %v21
  %73 = vmatprep.subr.mxu0 0.0
  %74 = vmatpush2.msra.mxu0 0.0
  %75 = vmatprep.subr.mxu0 0.0
  %76 = vmatpush2.msra.mxu0 0.0
  %77 = vmatprep.subr.mxu0 0.0
  %78 = vmatpush2.msra.mxu0 0.0
  %79 = vmatprep.subr.mxu0 0.0
  %80 = vmatpush2.msra.mxu0 0.0
  %81 = vmatprep.subr.mxu0 0.0
  %82 = vmatpush2.msra.mxu0 0.0
  %83 = vmatprep.subr.mxu0 0.0
  %84 = vmatpush2.msra.mxu0 0.0
  %85 = vmatprep.subr.mxu0 0.0
  %86 = vmatpush2.msra.mxu0 0.0
  %87 = vmatprep.subr.mxu0 0.0
  %88 = vmatpush2.msra.mxu0 0.0
  %89 = vmatprep.subr.mxu0 0.0
  %90 = vmatpush2.msra.mxu0 0.0
  %91 = vmatprep.subr.mxu0 0.0
  %92 = vmatpush2.msra.mxu0 0.0
  %93 = vmatprep.subr.mxu0 0.0
  %94 = vmatpush2.msra.mxu0 0.0
  %95 = vmatprep.subr.mxu0 0.0
  %96 = vmatpush2.msra.mxu0 0.0
  %97 = vmatprep.subr.mxu0 0.0
  %98 = vmatpush2.msra.mxu0 0.0
  %99 = vmatprep.subr.mxu0 0.0
  %100 = vmatpush2.msra.mxu0 0.0
  %101 = vmatprep.subr.mxu0 0.0
  %102 = vmatpush2.msra.mxu0 0.0
  %103 = vmatprep.subr.mxu0 0.0
  %104 = vmatpush2.msra.mxu0 0.0
  %105 = vmatprep.mubr.f32.mxu0 0.0
  %106 = vmatmul.mubr.f32.gmra.mxu0 %v39
  %v107 = vpop.f32.mrf.mxu0
  %v108 = vadd.f32 %v35, %v107
  %v109 = vpop.f32.mrf.mxu0
  %110 = vdwg.mxu0
  %v111 = vmax.f32 %v108, 0.0
  %v112 = vld [vmem:[%s3] sm:$0xff]
  %v113 = vld [vmem:[%s3 + $0x8] sm:$0xff]
  %v114 = vld [vmem:[%s3 + $0x10] sm:$0xff]
  %v115 = vld [vmem:[%s3 + $0x18] sm:$0xff]
  %v116 = vld [vmem:[%s3 + $0x20] sm:$0xff]
  %v117 = vld [vmem:[%s3 + $0x28] sm:$0xff]
  %v118 = vld [vmem:[%s3 + $0x30] sm:$0xff]
  %v119 = vld [vmem:[%s3 + $0x38] sm:$0xff]
  %v120 = vld [vmem:[%s3 + $0x40] sm:$0xff]
  %v121 = vld [vmem:[%s3 + $0x48] sm:$0xff]
  %v122 = vld [vmem:[%s3 + $0x50] sm:$0xff]
  %v123 = vld [vmem:[%s3 + $0x58] sm:$0xff]
  %v124 = vld [vmem:[%s3 + $0x60] sm:$0xff]
  %v125 = vld [vmem:[%s3 + $0x68] sm:$0xff]
  %v126 = vld [vmem:[%s3 + $0x70] sm:$0xff]
  %v127 = vld [vmem:[%s3 + $0x78] sm:$0xff]
  %v128 = vld [vmem:[%s4] sm:$0x1]
  %v130 = vlaneseq
  %v131 = vshrl.u32 %v130, 7
  %v132 = vsub.s32 0, %v131
  %v133 = vrot.slane %v128, %v132
  %135 = vmatprep.subr.mxu0 0.0
  %136 = vmatpush1.msra.mxu0 %v127
  %137 = vmatprep.subr.mxu0 0.0
  %138 = vmatpush1.msra.mxu0 %v126
  %139 = vmatprep.subr.mxu0 0.0
  %140 = vmatpush1.msra.mxu0 %v125
  %141 = vmatprep.subr.mxu0 0.0
  %142 = vmatpush1.msra.mxu0 %v124
  %143 = vmatprep.subr.mxu0 0.0
  %144 = vmatpush1.msra.mxu0 %v123
  %145 = vmatprep.subr.mxu0 0.0
  %146 = vmatpush1.msra.mxu0 %v122
  %147 = vmatprep.subr.mxu0 0.0
  %148 = vmatpush1.msra.mxu0 %v121
  %149 = vmatprep.subr.mxu0 0.0
  %150 = vmatpush1.msra.mxu0 %v120
  %151 = vmatprep.subr.mxu0 0.0
  %152 = vmatpush1.msra.mxu0 %v119
  %153 = vmatprep.subr.mxu0 0.0
  %154 = vmatpush1.msra.mxu0 %v118
  %155 = vmatprep.subr.mxu0 0.0
  %156 = vmatpush1.msra.mxu0 %v117
  %157 = vmatprep.subr.mxu0 0.0
  %158 = vmatpush1.msra.mxu0 %v116
  %159 = vmatprep.subr.mxu0 0.0
  %160 = vmatpush1.msra.mxu0 %v115
  %161 = vmatprep.subr.mxu0 0.0
  %162 = vmatpush1.msra.mxu0 %v114
  %163 = vmatprep.subr.mxu0 0.0
  %164 = vmatpush1.msra.mxu0 %v113
  %165 = vmatprep.subr.mxu0 0.0
  %166 = vmatpush1.msra.mxu0 %v112
  %167 = vmatprep.subr.mxu0 0.0
  %168 = vmatpush2.msra.mxu0 0.0
  %169 = vmatprep.subr.mxu0 0.0
  %170 = vmatpush2.msra.mxu0 0.0
  %171 = vmatprep.subr.mxu0 0.0
  %172 = vmatpush2.msra.mxu0 0.0
  %173 = vmatprep.subr.mxu0 0.0
  %174 = vmatpush2.msra.mxu0 0.0
  %175 = vmatprep.subr.mxu0 0.0
  %176 = vmatpush2.msra.mxu0 0.0
  %177 = vmatprep.subr.mxu0 0.0
  %178 = vmatpush2.msra.mxu0 0.0
  %179 = vmatprep.subr.mxu0 0.0
  %180 = vmatpush2.msra.mxu0 0.0
  %181 = vmatprep.subr.mxu0 0.0
  %182 = vmatpush2.msra.mxu0 0.0
  %183 = vmatprep.subr.mxu0 0.0
  %184 = vmatpush2.msra.mxu0 0.0
  %185 = vmatprep.subr.mxu0 0.0
  %186 = vmatpush2.msra.mxu0 0.0
  %187 = vmatprep.subr.mxu0 0.0
  %188 = vmatpush2.msra.mxu0 0.0
  %189 = vmatprep.subr.mxu0 0.0
  %190 = vmatpush2.msra.mxu0 0.0
  %191 = vmatprep.subr.mxu0 0.0
  %192 = vmatpush2.msra.mxu0 0.0
  %193 = vmatprep.subr.mxu0 0.0
  %194 = vmatpush2.msra.mxu0 0.0
  %195 = vmatprep.subr.mxu0 0.0
  %196 = vmatpush2.msra.mxu0 0.0
  %197 = vmatprep.subr.mxu0 0.0
  %198 = vmatpush2.msra.mxu0 0.0
  %199 = vmatprep.mubr.f32.mxu0 0.0
  %200 = vmatmul.mubr.f32.gmra.mxu0 %v111
  %v201 = vpop.f32.mrf.mxu0
  %v202 = vadd.f32 %v133, %v201
  %v203 = vpop.f32.mrf.mxu0
  %204 = vdwg.mxu0
  %vm205 = vcmask 64512
  %206 = vst.msk [vmem:[%s5] sm:$0xff] %vm205, %v202
  // Predicated region
  $region22: #{_lambda_.7} parent=0 // pred_check
    _
  $region23: #{_lambda_.7} parent=0 // pred_check_branch
    %208 = sbr.rel (0) target = $region25
  $region24: #{_lambda_.7} parent=0 // pred_region
    _
  $region25: #{_lambda_.7} parent=0 // pred_fallthru
    _
  // Predicated region
  $region26: #{_lambda_.7} parent=0 // pred_check
    _
  $region27: #{_lambda_.7} parent=0 // pred_check_branch
    %210 = sbr.rel (0) target = $region29
  $region28: #{_lambda_.7} parent=0 // pred_region
    _
  $region29: #{_lambda_.7} parent=0 // pred_fallthru
    _

</llo_original>
